<compile_context>
chip_gen: v6e
topology: v6e:2x2x1
jax: 0.10.0
libtpu: 0.0.40
codegen_flags: <defaults>
</compile_context>

<pallas_src>
import functools

import jax
import jax.numpy as jnp
import numpy as np
from jax import lax
from jax.experimental import pallas as pl
from jax.experimental.pallas import tpu as pltpu


# ----------------------------------------------------------------------------
# Fused kernel: all RNN layers + final Linear
# ----------------------------------------------------------------------------
def _fused_rnn_kernel(n_layers, *refs):
    """grid = (batch_blocks ['parallel'], time_chunks ['arbitrary']).

    refs = [x_ref,                                   (Tc, Bblk, D_in) bf16 chunk
            wih0_ref, whh0_ref, b0_ref, ...,         per layer: W_ih^T (bf16),
                                                     W_hh^T (bf16), b_ih+b_hh (f32)
            fc_w_ref, fc_b_ref,                      (H, O_pad) bf16, (1, O_pad) f32
            out_ref,                                 (Bblk, O_pad) f32
            h_ref,                                   VMEM (L, Bblk, H) f32 carry
            pre_ref,                                 VMEM (Tc*Bblk, H) f32 (x @ W_ih^T + b)
            seq_ref]                                 VMEM (Tc*Bblk, H) bf16 layer outputs
    """
    x_ref = refs[0]
    layer_refs = refs[1:1 + 3 * n_layers]
    fc_w_ref, fc_b_ref, out_ref, h_ref, pre_ref, seq_ref = refs[1 + 3 * n_layers:]

    chunk, b_blk, d_in = x_ref.shape
    c = pl.program_id(1)

    @pl.when(c == 0)
    def _init():
        h_ref[...] = jnp.zeros_like(h_ref)

    h_last = None
    for l in range(n_layers):
        wih_t = layer_refs[3 * l][...]       # (D_l, H) bf16 == W_ih^T
        whh_t = layer_refs[3 * l + 1][...]   # (H, H)   bf16 == W_hh^T
        bias = layer_refs[3 * l + 2][...]    # (1, H)   f32  == b_ih + b_hh

        # Layer input as a t-major (Tc*Bblk, D_l) slab.  For layer 0 this is a
        # free reshape of the time-major x chunk (Bblk % 8 == 0, so no tile
        # straddling); for deeper layers it is the previous layer's VMEM slab.
        if l == 0:
            cur = x_ref[...].reshape(chunk * b_blk, d_in)
        else:
            cur = seq_ref[...]

        # Hoisted input projection for the whole chunk: ONE big MXU matmul,
        # f32 accumulation, result parked in VMEM scratch.
        pre_ref[...] = (
            jnp.dot(cur, wih_t, preferred_element_type=jnp.float32) + bias)

        write_seq = (l + 1 < n_layers)

        def step(t, h, whh=whh_t, write_seq=write_seq):
            row = pl.multiple_of(t * b_blk, 8)          # sublane-aligned slice
            pre_t = pre_ref[pl.ds(row, b_blk), :]
            h_new = jnp.maximum(
                pre_t + jnp.dot(h.astype(jnp.bfloat16), whh,
                                preferred_element_type=jnp.float32),
                0.0)                                     # nonlinearity='relu'
            if write_seq:                                # next layer's input
                seq_ref[pl.ds(row, b_blk), :] = h_new.astype(seq_ref.dtype)
            return h_new

        h = lax.fori_loop(0, chunk, step, h_ref[l], unroll=min(chunk, 8))
        h_ref[l] = h                                     # carry across chunks
        h_last = h

    # Final Linear on the last timestep of the last layer, only on the last
    # chunk.  Output is lane-dense (O padded to a multiple of 128).
    @pl.when(c == pl.num_programs(1) - 1)
    def _finalize():
        out_ref[...] = (
            jnp.dot(h_last.astype(jnp.bfloat16), fc_w_ref[...],
                    preferred_element_type=jnp.float32)
            + fc_b_ref[...]
        ).astype(out_ref.dtype)


# ----------------------------------------------------------------------------
# Wrapper helpers
# ----------------------------------------------------------------------------
def _pick_time_chunk(T, rows_per_t, H, target_rows=512, max_scratch_bytes=24 << 20):
    """Largest useful divisor of T: enough rows (Tc*B) to fill the MXU M dim
    when possible, while the per-chunk pre/seq scratch (~6 B/elem) fits."""
    best = 1
    for d in range(1, T + 1):
        if T % d:
            continue
        if d * rows_per_t * H * 6 > max_scratch_bytes:
            break
        best = d
        if d * rows_per_t >= target_rows:
            break
    return best


def _vmem_limit_bytes(Tc, B_blk, D_in, H, L, O_pad):
    """Derive the scoped-VMEM request from the actual resident buffers, with
    per-generation ceilings (~48 MiB on v7x, ~100 MiB on v5e/v6e)."""
    resident = 2 * (Tc * B_blk * D_in * 2)                    # x chunk (bf16, 2 bufs)
    d_prev = D_in
    for _ in range(L):
        resident += 2 * ((d_prev * H + H * H) * 2 + H * 4)    # weights bf16 + bias f32
        d_prev = H
    resident += 2 * (H * O_pad * 2 + O_pad * 4)               # fc weight/bias
    resident += 2 * (B_blk * O_pad * 4)                       # output block
    resident += L * B_blk * H * 4                             # h carry scratch
    resident += Tc * B_blk * H * (4 + 2)                      # pre (f32) + seq (bf16)
    want = int(resident * 1.5) + (4 << 20)
    try:
        kind = jax.devices()[0].device_kind.lower()
    except Exception:  # pragma: no cover
        kind = ""
    ceiling = (48 << 20) if ("v7" in kind or "7x" in kind) else (100 << 20)
    return max(32 << 20, min(want, ceiling))


# ----------------------------------------------------------------------------
# Wrapper
# ----------------------------------------------------------------------------
@jax.jit
def rnn_v0_forward(x, params):
    """x: (B, T, input_size), batch_first like the PyTorch module."""
    B, T, D_in = x.shape
    layers = params["layers"]
    L = len(layers)
    H = layers[0][1].shape[0]

    fc_w_t = params["fc_w_t"]                   # (H, O)
    fc_b = params["fc_b"]                       # (1, O)
    O = fc_w_t.shape[1]
    O_pad = ((O + 127) // 128) * 128            # lane-dense FC output
    fc_w_p = jnp.pad(fc_w_t, ((0, 0), (0, O_pad - O))).astype(jnp.bfloat16)
    fc_b_p = jnp.pad(fc_b, ((0, 0), (0, O_pad - O)))

    # Sublane-aligned batch: pad to a multiple of 8 so every per-timestep
    # slice of `pre` is vreg-aligned.  Padded rows are sliced off at the end.
    B_pad = max(8, ((B + 7) // 8) * 8)
    if B_pad != B:
        x = jnp.pad(x, ((0, B_pad - B), (0, 0), (0, 0)))
    # Time-major layout makes the in-kernel (Tc,B,D)->(Tc*B,D) reshape free.
    x_tbd = jnp.transpose(x, (1, 0, 2)).astype(jnp.bfloat16)   # (T, B_pad, D)

    # v7x megacore: split (padded) batch across TensorCores when possible.
    n_bb = 2 if (B_pad % 16 == 0) else 1
    B_blk = B_pad // n_bb

    Tc = _pick_time_chunk(T, B_blk, H)
    n_chunks = T // Tc

    flat_inputs = [x_tbd]
    in_specs = [pl.BlockSpec((Tc, B_blk, D_in), lambda b, c: (c, b, 0))]
    for (wih_t, whh_t, bias) in layers:
        d_l = wih_t.shape[0]
        flat_inputs += [wih_t.astype(jnp.bfloat16),
                        whh_t.astype(jnp.bfloat16),
                        bias]
        # Grid-invariant weight blocks stay resident; on v7x they could
        # additionally be single-buffered (pipeline_mode) to halve their VMEM.
        in_specs += [
            pl.BlockSpec((d_l, H), lambda b, c: (0, 0)),
            pl.BlockSpec((H, H), lambda b, c: (0, 0)),
            pl.BlockSpec((1, H), lambda b, c: (0, 0)),
        ]
    flat_inputs += [fc_w_p, fc_b_p]
    in_specs += [
        pl.BlockSpec((H, O_pad), lambda b, c: (0, 0)),
        pl.BlockSpec((1, O_pad), lambda b, c: (0, 0)),
    ]

    # Advisory cost estimate for the XLA scheduler.
    flops = 0
    d_prev = D_in
    for _ in range(L):
        flops += 2 * T * B_pad * d_prev * H        # hoisted input projection
        flops += 2 * T * B_pad * H * H             # recurrent matmul
        d_prev = H
    flops += 2 * B_pad * H * O_pad                 # final FC
    bytes_accessed = int(
        sum(a.size * a.dtype.itemsize for a in flat_inputs) + B_pad * O_pad * 4)

    out = pl.pallas_call(
        functools.partial(_fused_rnn_kernel, L),
        out_shape=jax.ShapeDtypeStruct((B_pad, O_pad), jnp.float32),
        grid_spec=pltpu.PrefetchScalarGridSpec(
            num_scalar_prefetch=0,
            grid=(n_bb, n_chunks),
            in_specs=in_specs,
            out_specs=pl.BlockSpec((B_blk, O_pad), lambda b, c: (b, 0)),
            scratch_shapes=[
                pltpu.VMEM((L, B_blk, H), jnp.float32),       # recurrent carry
                pltpu.VMEM((Tc * B_blk, H), jnp.float32),     # pre = x@W_ih^T+b
                pltpu.VMEM((Tc * B_blk, H), jnp.bfloat16),    # per-layer outputs
            ]),
        compiler_params=pltpu.CompilerParams(
            dimension_semantics=("parallel", "arbitrary"),    # batch || , time seq
            vmem_limit_bytes=_vmem_limit_bytes(Tc, B_blk, D_in, H, L, O_pad)),
        cost_estimate=pl.CostEstimate(
            flops=flops, transcendentals=0, bytes_accessed=bytes_accessed),
    )(*flat_inputs)
    return out[:B, :O]


# ----------------------------------------------------------------------------
# Parameter init (PyTorch shapes, U(-1/sqrt(H), 1/sqrt(H)), bias folded)
# ----------------------------------------------------------------------------
def init_params(key, input_size, hidden_size, output_size, depth_number):
    k = 1.0 / np.sqrt(hidden_size)
    layers = []
    for layer in range(depth_number):
        d_in = input_size if layer == 0 else hidden_size
        key, k1, k2, k3, k4 = jax.random.split(key, 5)
        w_ih = jax.random.uniform(k1, (hidden_size, d_in), jnp.float32, -k, k)
        w_hh = jax.random.uniform(k2, (hidden_size, hidden_size), jnp.float32, -k, k)
        b_ih = jax.random.uniform(k3, (hidden_size,), jnp.float32, -k, k)
        b_hh = jax.random.uniform(k4, (hidden_size,), jnp.float32, -k, k)
        layers.append((w_ih.T, w_hh.T, (b_ih + b_hh).reshape(1, hidden_size)))
    key, k5, k6 = jax.random.split(key, 3)
    fc_w = jax.random.uniform(k5, (output_size, hidden_size), jnp.float32, -k, k)
    fc_b = jax.random.uniform(k6, (output_size,), jnp.float32, -k, k)
    return {"layers": layers, "fc_w_t": fc_w.T, "fc_b": fc_b.reshape(1, output_size)}


# High-precision host reference (float64 NumPy), same math as
# torch.nn.RNN(nonlinearity='relu', batch_first=True) + Linear on out[:, -1, :]
def reference_forward_np(x, params):
    seq = np.asarray(x, np.float64)                        # (B, T, D)
    B, T, _ = seq.shape
    for (wih_t, whh_t, bias) in params["layers"]:
        wih_t = np.asarray(wih_t, np.float64)
        whh_t = np.asarray(whh_t, np.float64)
        bias = np.asarray(bias, np.float64)
        H = whh_t.shape[0]
        h = np.zeros((B, H), np.float64)
        outs = []
        for t in range(T):
            h = np.maximum(seq[:, t, :] @ wih_t + h @ whh_t + bias, 0.0)
            outs.append(h)
        seq = np.stack(outs, axis=1)                       # (B, T, H)
    last = seq[:, -1, :]
    return last @ np.asarray(params["fc_w_t"], np.float64) \
        + np.asarray(params["fc_b"], np.float64)


if __name__ == "__main__":
    # Small shapes consistent with the module's forward: x is (batch, seq, input_size)
    B, T = 2, 8
    input_size, hidden_size, output_size, depth_number = 16, 32, 4, 2

    key = jax.random.PRNGKey(0)
    key, xk = jax.random.split(key)
    x = jax.random.normal(xk, (B, T, input_size), jnp.float32)

    params = init_params(key, input_size, hidden_size, output_size, depth_number)

    out = rnn_v0_forward(x, params)
    out = jax.block_until_ready(out)
    assert out.shape == (B, output_size)

    # bf16 operands on the MXU (same rounding as default-precision f32 dots)
    # vs an exact float64 reference -> loosened tolerance.
    ref = reference_forward_np(np.asarray(x),
                               jax.tree_util.tree_map(np.asarray, params))
    np.testing.assert_allclose(np.asarray(out, np.float64), ref,
                               rtol=5e-2, atol=2e-2)

    print("KERNEL_OK")
</pallas_src>

<mosaic_0001>
module attributes {stable_mosaic.version = 11 : i64} {
  func.func @_fused_rnn_kernel(%arg0: i32, %arg1: i32, %arg2: memref<8x8x16xbf16, #tpu.memory_space<vmem>>, %arg3: memref<16x32xbf16, #tpu.memory_space<vmem>>, %arg4: memref<32x32xbf16, #tpu.memory_space<vmem>>, %arg5: memref<1x32xf32, #tpu.memory_space<vmem>>, %arg6: memref<32x32xbf16, #tpu.memory_space<vmem>>, %arg7: memref<32x32xbf16, #tpu.memory_space<vmem>>, %arg8: memref<1x32xf32, #tpu.memory_space<vmem>>, %arg9: memref<32x128xbf16, #tpu.memory_space<vmem>>, %arg10: memref<1x128xf32, #tpu.memory_space<vmem>>, %arg11: memref<8x128xf32, #tpu.memory_space<vmem>>, %arg12: memref<2x8x32xf32, #tpu.memory_space<vmem>>, %arg13: memref<64x32xf32, #tpu.memory_space<vmem>>, %arg14: memref<64x32xbf16, #tpu.memory_space<vmem>>) attributes {dimension_semantics = [#tpu.dimension_semantics<parallel>, #tpu.dimension_semantics<arbitrary>], iteration_bounds = array<i64: 1, 1>, scalar_prefetch = 0 : i64, scratch_operands = 3 : i64, tpu.core_type = #tpu.core_type<tc>, window_params = [{transform_indices = @transform_0, window_bounds = array<i64: 8, 8, 16>}, {pipeline_mode = #tpu.pipeline_mode<synchronous>, transform_indices = @transform_1, window_bounds = array<i64: 16, 32>}, {pipeline_mode = #tpu.pipeline_mode<synchronous>, transform_indices = @transform_2, window_bounds = array<i64: 32, 32>}, {pipeline_mode = #tpu.pipeline_mode<synchronous>, transform_indices = @transform_3, window_bounds = array<i64: 1, 32>}, {pipeline_mode = #tpu.pipeline_mode<synchronous>, transform_indices = @transform_4, window_bounds = array<i64: 32, 32>}, {pipeline_mode = #tpu.pipeline_mode<synchronous>, transform_indices = @transform_5, window_bounds = array<i64: 32, 32>}, {pipeline_mode = #tpu.pipeline_mode<synchronous>, transform_indices = @transform_6, window_bounds = array<i64: 1, 32>}, {pipeline_mode = #tpu.pipeline_mode<synchronous>, transform_indices = @transform_7, window_bounds = array<i64: 32, 128>}, {pipeline_mode = #tpu.pipeline_mode<synchronous>, transform_indices = @transform_8, window_bounds = array<i64: 1, 128>}, {transform_indices = @transform_9, window_bounds = array<i64: 8, 128>}]} {
    %c0_i32 = arith.constant 0 : i32
    %0 = arith.cmpi eq, %arg1, %c0_i32 : i32
    %1 = arith.extui %0 : i1 to i32
    %c0_i32_0 = arith.constant 0 : i32
    %2 = arith.cmpi ne, %1, %c0_i32_0 : i32
    scf.if %2 {
      %cst_117 = arith.constant 0.000000e+00 : f32
      %201 = vector.broadcast %cst_117 : f32 to vector<2x8x32xf32>
      %c0_118 = arith.constant 0 : index
      %c0_119 = arith.constant 0 : index
      %c0_120 = arith.constant 0 : index
      %202 = vector.load %arg12[%c0_118, %c0_119, %c0_120] : memref<2x8x32xf32, #tpu.memory_space<vmem>>, vector<2x8x32xf32>
      tpu.vector_store %arg12[%c0_118, %c0_119, %c0_120], %201 {strides = array<i32>} : memref<2x8x32xf32, #tpu.memory_space<vmem>>, vector<2x8x32xf32>,
    } else {
    }
    %c0 = arith.constant 0 : index
    %c0_1 = arith.constant 0 : index
    %3 = vector.load %arg3[%c0, %c0_1] : memref<16x32xbf16, #tpu.memory_space<vmem>>, vector<16x32xbf16>
    %c0_2 = arith.constant 0 : index
    %c0_3 = arith.constant 0 : index
    %4 = vector.load %arg4[%c0_2, %c0_3] : memref<32x32xbf16, #tpu.memory_space<vmem>>, vector<32x32xbf16>
    %c0_4 = arith.constant 0 : index
    %c0_5 = arith.constant 0 : index
    %5 = vector.load %arg5[%c0_4, %c0_5] : memref<1x32xf32, #tpu.memory_space<vmem>>, vector<1x32xf32>
    %c0_6 = arith.constant 0 : index
    %c0_7 = arith.constant 0 : index
    %c0_8 = arith.constant 0 : index
    %6 = vector.load %arg2[%c0_6, %c0_7, %c0_8] : memref<8x8x16xbf16, #tpu.memory_space<vmem>>, vector<8x8x16xbf16>
    %7 = vector.shape_cast %6 : vector<8x8x16xbf16> to vector<64x16xbf16>
    %cst = arith.constant dense<0.000000e+00> : vector<64x32xf32>
    %8 = tpu.matmul %7, %3, %cst {dimension_numbers = #tpu.dot_dimension_numbers<[1], [0], [0], [1], [0, 0, 1, 1], [], []>} : vector<64x16xbf16>, vector<16x32xbf16>, vector<64x32xf32> -> vector<64x32xf32>
    %9 = vector.broadcast %5 : vector<1x32xf32> to vector<64x32xf32>
    %10 = arith.addf %8, %9 : vector<64x32xf32>
    %c0_9 = arith.constant 0 : index
    %c0_10 = arith.constant 0 : index
    %11 = vector.load %arg13[%c0_9, %c0_10] : memref<64x32xf32, #tpu.memory_space<vmem>>, vector<64x32xf32>
    tpu.vector_store %arg13[%c0_9, %c0_10], %10 {strides = array<i32>} : memref<64x32xf32, #tpu.memory_space<vmem>>, vector<64x32xf32>,
    %c0_11 = arith.constant 0 : index
    %c0_12 = arith.constant 0 : index
    %c0_13 = arith.constant 0 : index
    %12 = vector.load %arg12[%c0_11, %c0_12, %c0_13] : memref<2x8x32xf32, #tpu.memory_space<vmem>>, vector<1x8x32xf32>
    %13 = vector.shape_cast %12 : vector<1x8x32xf32> to vector<8x32xf32>
    %c0_i32_14 = arith.constant 0 : i32
    %c8_i32 = arith.constant 8 : i32
    %14 = arith.muli %c0_i32_14, %c8_i32 : i32
    %15 = tpu.assume_multiple %14, 8 : i32
    %16 = arith.index_cast %15 : i32 to index
    %c0_15 = arith.constant 0 : index
    %17 = vector.load %arg13[%16, %c0_15] : memref<64x32xf32, #tpu.memory_space<vmem>>, vector<8x32xf32>
    %18 = arith.truncf %13 : vector<8x32xf32> to vector<8x32xbf16>
    %cst_16 = arith.constant dense<0.000000e+00> : vector<8x32xf32>
    %19 = tpu.matmul %18, %4, %cst_16 {dimension_numbers = #tpu.dot_dimension_numbers<[1], [0], [0], [1], [0, 0, 1, 1], [], []>} : vector<8x32xbf16>, vector<32x32xbf16>, vector<8x32xf32> -> vector<8x32xf32>
    %20 = arith.addf %17, %19 : vector<8x32xf32>
    %cst_17 = arith.constant 0.000000e+00 : f32
    %21 = vector.broadcast %cst_17 : f32 to vector<8x32xf32>
    %22 = arith.maximumf %20, %21 : vector<8x32xf32>
    %23 = arith.truncf %22 : vector<8x32xf32> to vector<8x32xbf16>
    %24 = arith.index_cast %15 : i32 to index
    %c0_18 = arith.constant 0 : index
    %25 = vector.load %arg14[%24, %c0_18] : memref<64x32xbf16, #tpu.memory_space<vmem>>, vector<8x32xbf16>
    tpu.vector_store %arg14[%24, %c0_18], %23 {strides = array<i32>} : memref<64x32xbf16, #tpu.memory_space<vmem>>, vector<8x32xbf16>,
    %c1_i32 = arith.constant 1 : i32
    %c8_i32_19 = arith.constant 8 : i32
    %26 = arith.muli %c1_i32, %c8_i32_19 : i32
    %27 = tpu.assume_multiple %26, 8 : i32
    %28 = arith.index_cast %27 : i32 to index
    %c0_20 = arith.constant 0 : index
    %29 = vector.load %arg13[%28, %c0_20] : memref<64x32xf32, #tpu.memory_space<vmem>>, vector<8x32xf32>
    %30 = arith.truncf %22 : vector<8x32xf32> to vector<8x32xbf16>
    %cst_21 = arith.constant dense<0.000000e+00> : vector<8x32xf32>
    %31 = tpu.matmul %30, %4, %cst_21 {dimension_numbers = #tpu.dot_dimension_numbers<[1], [0], [0], [1], [0, 0, 1, 1], [], []>} : vector<8x32xbf16>, vector<32x32xbf16>, vector<8x32xf32> -> vector<8x32xf32>
    %32 = arith.addf %29, %31 : vector<8x32xf32>
    %cst_22 = arith.constant 0.000000e+00 : f32
    %33 = vector.broadcast %cst_22 : f32 to vector<8x32xf32>
    %34 = arith.maximumf %32, %33 : vector<8x32xf32>
    %35 = arith.truncf %34 : vector<8x32xf32> to vector<8x32xbf16>
    %36 = arith.index_cast %27 : i32 to index
    %c0_23 = arith.constant 0 : index
    %37 = vector.load %arg14[%36, %c0_23] : memref<64x32xbf16, #tpu.memory_space<vmem>>, vector<8x32xbf16>
    tpu.vector_store %arg14[%36, %c0_23], %35 {strides = array<i32>} : memref<64x32xbf16, #tpu.memory_space<vmem>>, vector<8x32xbf16>,
    %c2_i32 = arith.constant 2 : i32
    %c8_i32_24 = arith.constant 8 : i32
    %38 = arith.muli %c2_i32, %c8_i32_24 : i32
    %39 = tpu.assume_multiple %38, 8 : i32
    %40 = arith.index_cast %39 : i32 to index
    %c0_25 = arith.constant 0 : index
    %41 = vector.load %arg13[%40, %c0_25] : memref<64x32xf32, #tpu.memory_space<vmem>>, vector<8x32xf32>
    %42 = arith.truncf %34 : vector<8x32xf32> to vector<8x32xbf16>
    %cst_26 = arith.constant dense<0.000000e+00> : vector<8x32xf32>
    %43 = tpu.matmul %42, %4, %cst_26 {dimension_numbers = #tpu.dot_dimension_numbers<[1], [0], [0], [1], [0, 0, 1, 1], [], []>} : vector<8x32xbf16>, vector<32x32xbf16>, vector<8x32xf32> -> vector<8x32xf32>
    %44 = arith.addf %41, %43 : vector<8x32xf32>
    %cst_27 = arith.constant 0.000000e+00 : f32
    %45 = vector.broadcast %cst_27 : f32 to vector<8x32xf32>
    %46 = arith.maximumf %44, %45 : vector<8x32xf32>
    %47 = arith.truncf %46 : vector<8x32xf32> to vector<8x32xbf16>
    %48 = arith.index_cast %39 : i32 to index
    %c0_28 = arith.constant 0 : index
    %49 = vector.load %arg14[%48, %c0_28] : memref<64x32xbf16, #tpu.memory_space<vmem>>, vector<8x32xbf16>
    tpu.vector_store %arg14[%48, %c0_28], %47 {strides = array<i32>} : memref<64x32xbf16, #tpu.memory_space<vmem>>, vector<8x32xbf16>,
    %c3_i32 = arith.constant 3 : i32
    %c8_i32_29 = arith.constant 8 : i32
    %50 = arith.muli %c3_i32, %c8_i32_29 : i32
    %51 = tpu.assume_multiple %50, 8 : i32
    %52 = arith.index_cast %51 : i32 to index
    %c0_30 = arith.constant 0 : index
    %53 = vector.load %arg13[%52, %c0_30] : memref<64x32xf32, #tpu.memory_space<vmem>>, vector<8x32xf32>
    %54 = arith.truncf %46 : vector<8x32xf32> to vector<8x32xbf16>
    %cst_31 = arith.constant dense<0.000000e+00> : vector<8x32xf32>
    %55 = tpu.matmul %54, %4, %cst_31 {dimension_numbers = #tpu.dot_dimension_numbers<[1], [0], [0], [1], [0, 0, 1, 1], [], []>} : vector<8x32xbf16>, vector<32x32xbf16>, vector<8x32xf32> -> vector<8x32xf32>
    %56 = arith.addf %53, %55 : vector<8x32xf32>
    %cst_32 = arith.constant 0.000000e+00 : f32
    %57 = vector.broadcast %cst_32 : f32 to vector<8x32xf32>
    %58 = arith.maximumf %56, %57 : vector<8x32xf32>
    %59 = arith.truncf %58 : vector<8x32xf32> to vector<8x32xbf16>
    %60 = arith.index_cast %51 : i32 to index
    %c0_33 = arith.constant 0 : index
    %61 = vector.load %arg14[%60, %c0_33] : memref<64x32xbf16, #tpu.memory_space<vmem>>, vector<8x32xbf16>
    tpu.vector_store %arg14[%60, %c0_33], %59 {strides = array<i32>} : memref<64x32xbf16, #tpu.memory_space<vmem>>, vector<8x32xbf16>,
    %c4_i32 = arith.constant 4 : i32
    %c8_i32_34 = arith.constant 8 : i32
    %62 = arith.muli %c4_i32, %c8_i32_34 : i32
    %63 = tpu.assume_multiple %62, 8 : i32
    %64 = arith.index_cast %63 : i32 to index
    %c0_35 = arith.constant 0 : index
    %65 = vector.load %arg13[%64, %c0_35] : memref<64x32xf32, #tpu.memory_space<vmem>>, vector<8x32xf32>
    %66 = arith.truncf %58 : vector<8x32xf32> to vector<8x32xbf16>
    %cst_36 = arith.constant dense<0.000000e+00> : vector<8x32xf32>
    %67 = tpu.matmul %66, %4, %cst_36 {dimension_numbers = #tpu.dot_dimension_numbers<[1], [0], [0], [1], [0, 0, 1, 1], [], []>} : vector<8x32xbf16>, vector<32x32xbf16>, vector<8x32xf32> -> vector<8x32xf32>
    %68 = arith.addf %65, %67 : vector<8x32xf32>
    %cst_37 = arith.constant 0.000000e+00 : f32
    %69 = vector.broadcast %cst_37 : f32 to vector<8x32xf32>
    %70 = arith.maximumf %68, %69 : vector<8x32xf32>
    %71 = arith.truncf %70 : vector<8x32xf32> to vector<8x32xbf16>
    %72 = arith.index_cast %63 : i32 to index
    %c0_38 = arith.constant 0 : index
    %73 = vector.load %arg14[%72, %c0_38] : memref<64x32xbf16, #tpu.memory_space<vmem>>, vector<8x32xbf16>
    tpu.vector_store %arg14[%72, %c0_38], %71 {strides = array<i32>} : memref<64x32xbf16, #tpu.memory_space<vmem>>, vector<8x32xbf16>,
    %c5_i32 = arith.constant 5 : i32
    %c8_i32_39 = arith.constant 8 : i32
    %74 = arith.muli %c5_i32, %c8_i32_39 : i32
    %75 = tpu.assume_multiple %74, 8 : i32
    %76 = arith.index_cast %75 : i32 to index
    %c0_40 = arith.constant 0 : index
    %77 = vector.load %arg13[%76, %c0_40] : memref<64x32xf32, #tpu.memory_space<vmem>>, vector<8x32xf32>
    %78 = arith.truncf %70 : vector<8x32xf32> to vector<8x32xbf16>
    %cst_41 = arith.constant dense<0.000000e+00> : vector<8x32xf32>
    %79 = tpu.matmul %78, %4, %cst_41 {dimension_numbers = #tpu.dot_dimension_numbers<[1], [0], [0], [1], [0, 0, 1, 1], [], []>} : vector<8x32xbf16>, vector<32x32xbf16>, vector<8x32xf32> -> vector<8x32xf32>
    %80 = arith.addf %77, %79 : vector<8x32xf32>
    %cst_42 = arith.constant 0.000000e+00 : f32
    %81 = vector.broadcast %cst_42 : f32 to vector<8x32xf32>
    %82 = arith.maximumf %80, %81 : vector<8x32xf32>
    %83 = arith.truncf %82 : vector<8x32xf32> to vector<8x32xbf16>
    %84 = arith.index_cast %75 : i32 to index
    %c0_43 = arith.constant 0 : index
    %85 = vector.load %arg14[%84, %c0_43] : memref<64x32xbf16, #tpu.memory_space<vmem>>, vector<8x32xbf16>
    tpu.vector_store %arg14[%84, %c0_43], %83 {strides = array<i32>} : memref<64x32xbf16, #tpu.memory_space<vmem>>, vector<8x32xbf16>,
    %c6_i32 = arith.constant 6 : i32
    %c8_i32_44 = arith.constant 8 : i32
    %86 = arith.muli %c6_i32, %c8_i32_44 : i32
    %87 = tpu.assume_multiple %86, 8 : i32
    %88 = arith.index_cast %87 : i32 to index
    %c0_45 = arith.constant 0 : index
    %89 = vector.load %arg13[%88, %c0_45] : memref<64x32xf32, #tpu.memory_space<vmem>>, vector<8x32xf32>
    %90 = arith.truncf %82 : vector<8x32xf32> to vector<8x32xbf16>
    %cst_46 = arith.constant dense<0.000000e+00> : vector<8x32xf32>
    %91 = tpu.matmul %90, %4, %cst_46 {dimension_numbers = #tpu.dot_dimension_numbers<[1], [0], [0], [1], [0, 0, 1, 1], [], []>} : vector<8x32xbf16>, vector<32x32xbf16>, vector<8x32xf32> -> vector<8x32xf32>
    %92 = arith.addf %89, %91 : vector<8x32xf32>
    %cst_47 = arith.constant 0.000000e+00 : f32
    %93 = vector.broadcast %cst_47 : f32 to vector<8x32xf32>
    %94 = arith.maximumf %92, %93 : vector<8x32xf32>
    %95 = arith.truncf %94 : vector<8x32xf32> to vector<8x32xbf16>
    %96 = arith.index_cast %87 : i32 to index
    %c0_48 = arith.constant 0 : index
    %97 = vector.load %arg14[%96, %c0_48] : memref<64x32xbf16, #tpu.memory_space<vmem>>, vector<8x32xbf16>
    tpu.vector_store %arg14[%96, %c0_48], %95 {strides = array<i32>} : memref<64x32xbf16, #tpu.memory_space<vmem>>, vector<8x32xbf16>,
    %c7_i32 = arith.constant 7 : i32
    %c8_i32_49 = arith.constant 8 : i32
    %98 = arith.muli %c7_i32, %c8_i32_49 : i32
    %99 = tpu.assume_multiple %98, 8 : i32
    %100 = arith.index_cast %99 : i32 to index
    %c0_50 = arith.constant 0 : index
    %101 = vector.load %arg13[%100, %c0_50] : memref<64x32xf32, #tpu.memory_space<vmem>>, vector<8x32xf32>
    %102 = arith.truncf %94 : vector<8x32xf32> to vector<8x32xbf16>
    %cst_51 = arith.constant dense<0.000000e+00> : vector<8x32xf32>
    %103 = tpu.matmul %102, %4, %cst_51 {dimension_numbers = #tpu.dot_dimension_numbers<[1], [0], [0], [1], [0, 0, 1, 1], [], []>} : vector<8x32xbf16>, vector<32x32xbf16>, vector<8x32xf32> -> vector<8x32xf32>
    %104 = arith.addf %101, %103 : vector<8x32xf32>
    %cst_52 = arith.constant 0.000000e+00 : f32
    %105 = vector.broadcast %cst_52 : f32 to vector<8x32xf32>
    %106 = arith.maximumf %104, %105 : vector<8x32xf32>
    %107 = arith.truncf %106 : vector<8x32xf32> to vector<8x32xbf16>
    %108 = arith.index_cast %99 : i32 to index
    %c0_53 = arith.constant 0 : index
    %109 = vector.load %arg14[%108, %c0_53] : memref<64x32xbf16, #tpu.memory_space<vmem>>, vector<8x32xbf16>
    tpu.vector_store %arg14[%108, %c0_53], %107 {strides = array<i32>} : memref<64x32xbf16, #tpu.memory_space<vmem>>, vector<8x32xbf16>,
    %c8_i32_54 = arith.constant 8 : i32
    %c0_55 = arith.constant 0 : index
    %c0_56 = arith.constant 0 : index
    %c0_57 = arith.constant 0 : index
    %110 = vector.load %arg12[%c0_55, %c0_56, %c0_57] : memref<2x8x32xf32, #tpu.memory_space<vmem>>, vector<1x8x32xf32>
    %111 = vector.shape_cast %110 : vector<1x8x32xf32> to vector<8x32xf32>
    %112 = vector.shape_cast %106 : vector<8x32xf32> to vector<1x8x32xf32>
    tpu.vector_store %arg12[%c0_55, %c0_56, %c0_57], %112 {strides = array<i32>} : memref<2x8x32xf32, #tpu.memory_space<vmem>>, vector<1x8x32xf32>,
    %c0_58 = arith.constant 0 : index
    %c0_59 = arith.constant 0 : index
    %113 = vector.load %arg6[%c0_58, %c0_59] : memref<32x32xbf16, #tpu.memory_space<vmem>>, vector<32x32xbf16>
    %c0_60 = arith.constant 0 : index
    %c0_61 = arith.constant 0 : index
    %114 = vector.load %arg7[%c0_60, %c0_61] : memref<32x32xbf16, #tpu.memory_space<vmem>>, vector<32x32xbf16>
    %c0_62 = arith.constant 0 : index
    %c0_63 = arith.constant 0 : index
    %115 = vector.load %arg8[%c0_62, %c0_63] : memref<1x32xf32, #tpu.memory_space<vmem>>, vector<1x32xf32>
    %c0_64 = arith.constant 0 : index
    %c0_65 = arith.constant 0 : index
    %116 = vector.load %arg14[%c0_64, %c0_65] : memref<64x32xbf16, #tpu.memory_space<vmem>>, vector<64x32xbf16>
    %cst_66 = arith.constant dense<0.000000e+00> : vector<64x32xf32>
    %117 = tpu.matmul %116, %113, %cst_66 {dimension_numbers = #tpu.dot_dimension_numbers<[1], [0], [0], [1], [0, 0, 1, 1], [], []>} : vector<64x32xbf16>, vector<32x32xbf16>, vector<64x32xf32> -> vector<64x32xf32>
    %118 = vector.broadcast %115 : vector<1x32xf32> to vector<64x32xf32>
    %119 = arith.addf %117, %118 : vector<64x32xf32>
    %c0_67 = arith.constant 0 : index
    %c0_68 = arith.constant 0 : index
    %120 = vector.load %arg13[%c0_67, %c0_68] : memref<64x32xf32, #tpu.memory_space<vmem>>, vector<64x32xf32>
    tpu.vector_store %arg13[%c0_67, %c0_68], %119 {strides = array<i32>} : memref<64x32xf32, #tpu.memory_space<vmem>>, vector<64x32xf32>,
    %c1 = arith.constant 1 : index
    %c0_69 = arith.constant 0 : index
    %c0_70 = arith.constant 0 : index
    %121 = vector.load %arg12[%c1, %c0_69, %c0_70] : memref<2x8x32xf32, #tpu.memory_space<vmem>>, vector<1x8x32xf32>
    %122 = vector.shape_cast %121 : vector<1x8x32xf32> to vector<8x32xf32>
    %c0_i32_71 = arith.constant 0 : i32
    %c8_i32_72 = arith.constant 8 : i32
    %123 = arith.muli %c0_i32_71, %c8_i32_72 : i32
    %124 = tpu.assume_multiple %123, 8 : i32
    %125 = arith.index_cast %124 : i32 to index
    %c0_73 = arith.constant 0 : index
    %126 = vector.load %arg13[%125, %c0_73] : memref<64x32xf32, #tpu.memory_space<vmem>>, vector<8x32xf32>
    %127 = arith.truncf %122 : vector<8x32xf32> to vector<8x32xbf16>
    %cst_74 = arith.constant dense<0.000000e+00> : vector<8x32xf32>
    %128 = tpu.matmul %127, %114, %cst_74 {dimension_numbers = #tpu.dot_dimension_numbers<[1], [0], [0], [1], [0, 0, 1, 1], [], []>} : vector<8x32xbf16>, vector<32x32xbf16>, vector<8x32xf32> -> vector<8x32xf32>
    %129 = arith.addf %126, %128 : vector<8x32xf32>
    %cst_75 = arith.constant 0.000000e+00 : f32
    %130 = vector.broadcast %cst_75 : f32 to vector<8x32xf32>
    %131 = arith.maximumf %129, %130 : vector<8x32xf32>
    %c1_i32_76 = arith.constant 1 : i32
    %c8_i32_77 = arith.constant 8 : i32
    %132 = arith.muli %c1_i32_76, %c8_i32_77 : i32
    %133 = tpu.assume_multiple %132, 8 : i32
    %134 = arith.index_cast %133 : i32 to index
    %c0_78 = arith.constant 0 : index
    %135 = vector.load %arg13[%134, %c0_78] : memref<64x32xf32, #tpu.memory_space<vmem>>, vector<8x32xf32>
    %136 = arith.truncf %131 : vector<8x32xf32> to vector<8x32xbf16>
    %cst_79 = arith.constant dense<0.000000e+00> : vector<8x32xf32>
    %137 = tpu.matmul %136, %114, %cst_79 {dimension_numbers = #tpu.dot_dimension_numbers<[1], [0], [0], [1], [0, 0, 1, 1], [], []>} : vector<8x32xbf16>, vector<32x32xbf16>, vector<8x32xf32> -> vector<8x32xf32>
    %138 = arith.addf %135, %137 : vector<8x32xf32>
    %cst_80 = arith.constant 0.000000e+00 : f32
    %139 = vector.broadcast %cst_80 : f32 to vector<8x32xf32>
    %140 = arith.maximumf %138, %139 : vector<8x32xf32>
    %c2_i32_81 = arith.constant 2 : i32
    %c8_i32_82 = arith.constant 8 : i32
    %141 = arith.muli %c2_i32_81, %c8_i32_82 : i32
    %142 = tpu.assume_multiple %141, 8 : i32
    %143 = arith.index_cast %142 : i32 to index
    %c0_83 = arith.constant 0 : index
    %144 = vector.load %arg13[%143, %c0_83] : memref<64x32xf32, #tpu.memory_space<vmem>>, vector<8x32xf32>
    %145 = arith.truncf %140 : vector<8x32xf32> to vector<8x32xbf16>
    %cst_84 = arith.constant dense<0.000000e+00> : vector<8x32xf32>
    %146 = tpu.matmul %145, %114, %cst_84 {dimension_numbers = #tpu.dot_dimension_numbers<[1], [0], [0], [1], [0, 0, 1, 1], [], []>} : vector<8x32xbf16>, vector<32x32xbf16>, vector<8x32xf32> -> vector<8x32xf32>
    %147 = arith.addf %144, %146 : vector<8x32xf32>
    %cst_85 = arith.constant 0.000000e+00 : f32
    %148 = vector.broadcast %cst_85 : f32 to vector<8x32xf32>
    %149 = arith.maximumf %147, %148 : vector<8x32xf32>
    %c3_i32_86 = arith.constant 3 : i32
    %c8_i32_87 = arith.constant 8 : i32
    %150 = arith.muli %c3_i32_86, %c8_i32_87 : i32
    %151 = tpu.assume_multiple %150, 8 : i32
    %152 = arith.index_cast %151 : i32 to index
    %c0_88 = arith.constant 0 : index
    %153 = vector.load %arg13[%152, %c0_88] : memref<64x32xf32, #tpu.memory_space<vmem>>, vector<8x32xf32>
    %154 = arith.truncf %149 : vector<8x32xf32> to vector<8x32xbf16>
    %cst_89 = arith.constant dense<0.000000e+00> : vector<8x32xf32>
    %155 = tpu.matmul %154, %114, %cst_89 {dimension_numbers = #tpu.dot_dimension_numbers<[1], [0], [0], [1], [0, 0, 1, 1], [], []>} : vector<8x32xbf16>, vector<32x32xbf16>, vector<8x32xf32> -> vector<8x32xf32>
    %156 = arith.addf %153, %155 : vector<8x32xf32>
    %cst_90 = arith.constant 0.000000e+00 : f32
    %157 = vector.broadcast %cst_90 : f32 to vector<8x32xf32>
    %158 = arith.maximumf %156, %157 : vector<8x32xf32>
    %c4_i32_91 = arith.constant 4 : i32
    %c8_i32_92 = arith.constant 8 : i32
    %159 = arith.muli %c4_i32_91, %c8_i32_92 : i32
    %160 = tpu.assume_multiple %159, 8 : i32
    %161 = arith.index_cast %160 : i32 to index
    %c0_93 = arith.constant 0 : index
    %162 = vector.load %arg13[%161, %c0_93] : memref<64x32xf32, #tpu.memory_space<vmem>>, vector<8x32xf32>
    %163 = arith.truncf %158 : vector<8x32xf32> to vector<8x32xbf16>
    %cst_94 = arith.constant dense<0.000000e+00> : vector<8x32xf32>
    %164 = tpu.matmul %163, %114, %cst_94 {dimension_numbers = #tpu.dot_dimension_numbers<[1], [0], [0], [1], [0, 0, 1, 1], [], []>} : vector<8x32xbf16>, vector<32x32xbf16>, vector<8x32xf32> -> vector<8x32xf32>
    %165 = arith.addf %162, %164 : vector<8x32xf32>
    %cst_95 = arith.constant 0.000000e+00 : f32
    %166 = vector.broadcast %cst_95 : f32 to vector<8x32xf32>
    %167 = arith.maximumf %165, %166 : vector<8x32xf32>
    %c5_i32_96 = arith.constant 5 : i32
    %c8_i32_97 = arith.constant 8 : i32
    %168 = arith.muli %c5_i32_96, %c8_i32_97 : i32
    %169 = tpu.assume_multiple %168, 8 : i32
    %170 = arith.index_cast %169 : i32 to index
    %c0_98 = arith.constant 0 : index
    %171 = vector.load %arg13[%170, %c0_98] : memref<64x32xf32, #tpu.memory_space<vmem>>, vector<8x32xf32>
    %172 = arith.truncf %167 : vector<8x32xf32> to vector<8x32xbf16>
    %cst_99 = arith.constant dense<0.000000e+00> : vector<8x32xf32>
    %173 = tpu.matmul %172, %114, %cst_99 {dimension_numbers = #tpu.dot_dimension_numbers<[1], [0], [0], [1], [0, 0, 1, 1], [], []>} : vector<8x32xbf16>, vector<32x32xbf16>, vector<8x32xf32> -> vector<8x32xf32>
    %174 = arith.addf %171, %173 : vector<8x32xf32>
    %cst_100 = arith.constant 0.000000e+00 : f32
    %175 = vector.broadcast %cst_100 : f32 to vector<8x32xf32>
    %176 = arith.maximumf %174, %175 : vector<8x32xf32>
    %c6_i32_101 = arith.constant 6 : i32
    %c8_i32_102 = arith.constant 8 : i32
    %177 = arith.muli %c6_i32_101, %c8_i32_102 : i32
    %178 = tpu.assume_multiple %177, 8 : i32
    %179 = arith.index_cast %178 : i32 to index
    %c0_103 = arith.constant 0 : index
    %180 = vector.load %arg13[%179, %c0_103] : memref<64x32xf32, #tpu.memory_space<vmem>>, vector<8x32xf32>
    %181 = arith.truncf %176 : vector<8x32xf32> to vector<8x32xbf16>
    %cst_104 = arith.constant dense<0.000000e+00> : vector<8x32xf32>
    %182 = tpu.matmul %181, %114, %cst_104 {dimension_numbers = #tpu.dot_dimension_numbers<[1], [0], [0], [1], [0, 0, 1, 1], [], []>} : vector<8x32xbf16>, vector<32x32xbf16>, vector<8x32xf32> -> vector<8x32xf32>
    %183 = arith.addf %180, %182 : vector<8x32xf32>
    %cst_105 = arith.constant 0.000000e+00 : f32
    %184 = vector.broadcast %cst_105 : f32 to vector<8x32xf32>
    %185 = arith.maximumf %183, %184 : vector<8x32xf32>
    %c7_i32_106 = arith.constant 7 : i32
    %c8_i32_107 = arith.constant 8 : i32
    %186 = arith.muli %c7_i32_106, %c8_i32_107 : i32
    %187 = tpu.assume_multiple %186, 8 : i32
    %188 = arith.index_cast %187 : i32 to index
    %c0_108 = arith.constant 0 : index
    %189 = vector.load %arg13[%188, %c0_108] : memref<64x32xf32, #tpu.memory_space<vmem>>, vector<8x32xf32>
    %190 = arith.truncf %185 : vector<8x32xf32> to vector<8x32xbf16>
    %cst_109 = arith.constant dense<0.000000e+00> : vector<8x32xf32>
    %191 = tpu.matmul %190, %114, %cst_109 {dimension_numbers = #tpu.dot_dimension_numbers<[1], [0], [0], [1], [0, 0, 1, 1], [], []>} : vector<8x32xbf16>, vector<32x32xbf16>, vector<8x32xf32> -> vector<8x32xf32>
    %192 = arith.addf %189, %191 : vector<8x32xf32>
    %cst_110 = arith.constant 0.000000e+00 : f32
    %193 = vector.broadcast %cst_110 : f32 to vector<8x32xf32>
    %194 = arith.maximumf %192, %193 : vector<8x32xf32>
    %c8_i32_111 = arith.constant 8 : i32
    %c1_112 = arith.constant 1 : index
    %c0_113 = arith.constant 0 : index
    %c0_114 = arith.constant 0 : index
    %195 = vector.load %arg12[%c1_112, %c0_113, %c0_114] : memref<2x8x32xf32, #tpu.memory_space<vmem>>, vector<1x8x32xf32>
    %196 = vector.shape_cast %195 : vector<1x8x32xf32> to vector<8x32xf32>
    %197 = vector.shape_cast %194 : vector<8x32xf32> to vector<1x8x32xf32>
    tpu.vector_store %arg12[%c1_112, %c0_113, %c0_114], %197 {strides = array<i32>} : memref<2x8x32xf32, #tpu.memory_space<vmem>>, vector<1x8x32xf32>,
    %c0_i32_115 = arith.constant 0 : i32
    %198 = arith.cmpi eq, %arg1, %c0_i32_115 : i32
    %199 = arith.extui %198 : i1 to i32
    %c0_i32_116 = arith.constant 0 : i32
    %200 = arith.cmpi ne, %199, %c0_i32_116 : i32
    scf.if %200 {
      %201 = arith.truncf %194 : vector<8x32xf32> to vector<8x32xbf16>
      %c0_117 = arith.constant 0 : index
      %c0_118 = arith.constant 0 : index
      %202 = vector.load %arg9[%c0_117, %c0_118] : memref<32x128xbf16, #tpu.memory_space<vmem>>, vector<32x128xbf16>
      %cst_119 = arith.constant dense<0.000000e+00> : vector<8x128xf32>
      %203 = tpu.matmul %201, %202, %cst_119 {dimension_numbers = #tpu.dot_dimension_numbers<[1], [0], [0], [1], [0, 0, 1, 1], [], []>} : vector<8x32xbf16>, vector<32x128xbf16>, vector<8x128xf32> -> vector<8x128xf32>
      %c0_120 = arith.constant 0 : index
      %c0_121 = arith.constant 0 : index
      %204 = vector.load %arg10[%c0_120, %c0_121] : memref<1x128xf32, #tpu.memory_space<vmem>>, vector<1x128xf32>
      %205 = vector.broadcast %204 : vector<1x128xf32> to vector<8x128xf32>
      %206 = arith.addf %203, %205 : vector<8x128xf32>
      %c0_122 = arith.constant 0 : index
      %c0_123 = arith.constant 0 : index
      %207 = vector.load %arg11[%c0_122, %c0_123] : memref<8x128xf32, #tpu.memory_space<vmem>>, vector<8x128xf32>
      tpu.vector_store %arg11[%c0_122, %c0_123], %206 {strides = array<i32>} : memref<8x128xf32, #tpu.memory_space<vmem>>, vector<8x128xf32>,
    } else {
    }
    return
  }
  func.func @transform_0(%arg0: i32, %arg1: i32) -> (i32, i32, i32) {
    %c0_i32 = arith.constant 0 : i32
    %c0_i32_0 = arith.constant 0 : i32
    return %arg1, %arg0, %c0_i32 : i32, i32, i32
  }
  func.func @transform_1(%arg0: i32, %arg1: i32) -> (i32, i32) {
    %c0_i32 = arith.constant 0 : i32
    %c0_i32_0 = arith.constant 0 : i32
    %c0_i32_1 = arith.constant 0 : i32
    return %c0_i32, %c0_i32_0 : i32, i32
  }
  func.func @transform_2(%arg0: i32, %arg1: i32) -> (i32, i32) {
    %c0_i32 = arith.constant 0 : i32
    %c0_i32_0 = arith.constant 0 : i32
    %c0_i32_1 = arith.constant 0 : i32
    return %c0_i32, %c0_i32_0 : i32, i32
  }
  func.func @transform_3(%arg0: i32, %arg1: i32) -> (i32, i32) {
    %c0_i32 = arith.constant 0 : i32
    %c0_i32_0 = arith.constant 0 : i32
    %c0_i32_1 = arith.constant 0 : i32
    return %c0_i32, %c0_i32_0 : i32, i32
  }
  func.func @transform_4(%arg0: i32, %arg1: i32) -> (i32, i32) {
    %c0_i32 = arith.constant 0 : i32
    %c0_i32_0 = arith.constant 0 : i32
    %c0_i32_1 = arith.constant 0 : i32
    return %c0_i32, %c0_i32_0 : i32, i32
  }
  func.func @transform_5(%arg0: i32, %arg1: i32) -> (i32, i32) {
    %c0_i32 = arith.constant 0 : i32
    %c0_i32_0 = arith.constant 0 : i32
    %c0_i32_1 = arith.constant 0 : i32
    return %c0_i32, %c0_i32_0 : i32, i32
  }
  func.func @transform_6(%arg0: i32, %arg1: i32) -> (i32, i32) {
    %c0_i32 = arith.constant 0 : i32
    %c0_i32_0 = arith.constant 0 : i32
    %c0_i32_1 = arith.constant 0 : i32
    return %c0_i32, %c0_i32_0 : i32, i32
  }
  func.func @transform_7(%arg0: i32, %arg1: i32) -> (i32, i32) {
    %c0_i32 = arith.constant 0 : i32
    %c0_i32_0 = arith.constant 0 : i32
    %c0_i32_1 = arith.constant 0 : i32
    return %c0_i32, %c0_i32_0 : i32, i32
  }
  func.func @transform_8(%arg0: i32, %arg1: i32) -> (i32, i32) {
    %c0_i32 = arith.constant 0 : i32
    %c0_i32_0 = arith.constant 0 : i32
    %c0_i32_1 = arith.constant 0 : i32
    return %c0_i32, %c0_i32_0 : i32, i32
  }
  func.func @transform_9(%arg0: i32, %arg1: i32) -> (i32, i32) {
    %c0_i32 = arith.constant 0 : i32
    %c0_i32_0 = arith.constant 0 : i32
    return %arg0, %c0_i32 : i32, i32
  }
}

</mosaic_0001>

<llo_original>
// kernel: rnn_v0_forward.1
$region0: #{rnn_v0_forward.1}
  #allocation0 [shape = 'u32[]', space=smem, size = 0x4, offset = 0x4, fixed_abs, tag = 'smem constant byte address 0x4 - core index']
  #allocation1 [shape = 'u32[144,128]{1,0:T(1,128)}', space=vmem, size = 0x12000, scoped, tag = 'internal scratch']
  #allocation2 [shape = 'f32[2,8,32]{2,1,0:T(8,128)}', space=vmem, size = 0x2000, scoped, tag = 'scratch operand']
  #allocation3 [shape = 'f32[64,32]{1,0:T(8,128)}', space=vmem, size = 0x8000, scoped, tag = 'scratch operand']
  #allocation4 [shape = 'bf16[64,32]{1,0:T(8,128)(2,1)}', space=vmem, size = 0x4000, scoped, tag = 'scratch operand']
  %s0 = inlined_call_operand.vmem [shape: bf16[8,8,16], index: 0, kind: input, shape index: {}]
  %s1 = inlined_call_operand.vmem [shape: bf16[16,32], index: 1, kind: input, shape index: {}]
  %s2 = inlined_call_operand.vmem [shape: bf16[32,32], index: 2, kind: input, shape index: {}]
  %s3 = inlined_call_operand.vmem [shape: f32[1,32], index: 3, kind: input, shape index: {}]
  %s4 = inlined_call_operand.vmem [shape: bf16[32,32], index: 4, kind: input, shape index: {}]
  %s5 = inlined_call_operand.vmem [shape: bf16[32,32], index: 5, kind: input, shape index: {}]
  %s6 = inlined_call_operand.vmem [shape: f32[1,32], index: 6, kind: input, shape index: {}]
  %s7 = inlined_call_operand.vmem [shape: bf16[32,128], index: 7, kind: input, shape index: {}]
  %s8 = inlined_call_operand.vmem [shape: f32[1,128], index: 8, kind: input, shape index: {}]
  %s9 = inlined_call_operand.vmem [shape: f32[8,128], index: 9, kind: output, shape index: {}]
  %s10 = sld [smem:[#allocation0]]
  $region54: #{rnn_v0_forward.1} parent=0
    _
  %s12 = ssub.s32 1, %s10
  %s13 = scalar_select 0, %s12, %s10
  // Predicated region
  $region2: #{rnn_v0_forward.1} parent=0 // pred_check
    _
  $region3: #{rnn_v0_forward.1} parent=0 // pred_check_branch
    %15 = sbr.rel (0) target = $region5
  $region4: #{rnn_v0_forward.1} parent=0 // pred_region
    _
  $region5: #{rnn_v0_forward.1} parent=0 // pred_fallthru
    _
  // Predicated region
  $region6: #{rnn_v0_forward.1} parent=0 // pred_check
    _
  $region7: #{rnn_v0_forward.1} parent=0 // pred_check_branch
    %17 = sbr.rel (0) target = $region9
  $region8: #{rnn_v0_forward.1} parent=0 // pred_region
    _
  $region9: #{rnn_v0_forward.1} parent=0 // pred_fallthru
    _
  // Predicated region
  $region10: #{rnn_v0_forward.1} parent=0 // pred_check
    _
  $region11: #{rnn_v0_forward.1} parent=0 // pred_check_branch
    %19 = sbr.rel (0) target = $region13
  $region12: #{rnn_v0_forward.1} parent=0 // pred_region
    _
  $region13: #{rnn_v0_forward.1} parent=0 // pred_fallthru
    _
  // Predicated region
  $region14: #{rnn_v0_forward.1} parent=0 // pred_check
    _
  $region15: #{rnn_v0_forward.1} parent=0 // pred_check_branch
    %21 = sbr.rel (0) target = $region17
  $region16: #{rnn_v0_forward.1} parent=0 // pred_region
    _
  $region17: #{rnn_v0_forward.1} parent=0 // pred_fallthru
    _
  // Predicated region
  $region18: #{rnn_v0_forward.1} parent=0 // pred_check
    _
  $region19: #{rnn_v0_forward.1} parent=0 // pred_check_branch
    %23 = sbr.rel (0) target = $region21
  $region20: #{rnn_v0_forward.1} parent=0 // pred_region
    _
  $region21: #{rnn_v0_forward.1} parent=0 // pred_fallthru
    _
  // Predicated region
  $region22: #{rnn_v0_forward.1} parent=0 // pred_check
    _
  $region23: #{rnn_v0_forward.1} parent=0 // pred_check_branch
    %25 = sbr.rel (0) target = $region25
  $region24: #{rnn_v0_forward.1} parent=0 // pred_region
    _
  $region25: #{rnn_v0_forward.1} parent=0 // pred_fallthru
    _
  // Predicated region
  $region26: #{rnn_v0_forward.1} parent=0 // pred_check
    _
  $region27: #{rnn_v0_forward.1} parent=0 // pred_check_branch
    %27 = sbr.rel (0) target = $region29
  $region28: #{rnn_v0_forward.1} parent=0 // pred_region
    _
  $region29: #{rnn_v0_forward.1} parent=0 // pred_fallthru
    _
  // Predicated region
  $region30: #{rnn_v0_forward.1} parent=0 // pred_check
    _
  $region31: #{rnn_v0_forward.1} parent=0 // pred_check_branch
    %29 = sbr.rel (0) target = $region33
  $region32: #{rnn_v0_forward.1} parent=0 // pred_region
    _
  $region33: #{rnn_v0_forward.1} parent=0 // pred_fallthru
    _
  // Predicated region
  $region34: #{rnn_v0_forward.1} parent=0 // pred_check
    _
  $region35: #{rnn_v0_forward.1} parent=0 // pred_check_branch
    %31 = sbr.rel (0) target = $region37
  $region36: #{rnn_v0_forward.1} parent=0 // pred_region
    _
  $region37: #{rnn_v0_forward.1} parent=0 // pred_fallthru
    _
  %p33 = scmp.eq.s32.totalorder 0, 0
  // Predicated region
  $region38: #{rnn_v0_forward.1} parent=0 // pred_check
    %p34 = pneg %p33
  $region39: #{rnn_v0_forward.1} parent=0 // pred_check_branch
    %36 = sbr.rel (%p34) target = $region41
  $region40: #{rnn_v0_forward.1} parent=0 // pred_region
    %vm37 = vcmask 261120
    %38 = vst.msk [vmem:[#allocation2] sm:$0xff] %vm37, 0.0
    %39 = vst.msk [vmem:[#allocation2 + $0x8] sm:$0xff] %vm37, 0.0
  $region41: #{rnn_v0_forward.1} parent=0 // pred_fallthru
    _
  %v40 = vld [vmem:[%s1] sm:$0xf]
  %v41 = vld [vmem:[%s1 + $0x4] sm:$0xf]
  %v42 = vld [vmem:[%s2] sm:$0xf]
  %v43 = vld [vmem:[%s2 + $0x4] sm:$0xf]
  %v44 = vld [vmem:[%s2 + $0x8] sm:$0xf]
  %v45 = vld [vmem:[%s2 + $0xc] sm:$0xf]
  %v46 = vld [vmem:[%s3] sm:$0x1]
  %v47 = vld [vmem:[%s0] sm:$0xf]
  %v48 = vld [vmem:[%s0 + $0x4] sm:$0xf]
  %v49 = vld [vmem:[%s0 + $0x8] sm:$0xf]
  %v50 = vld [vmem:[%s0 + $0xc] sm:$0xf]
  %v51 = vld [vmem:[%s0 + $0x10] sm:$0xf]
  %v52 = vld [vmem:[%s0 + $0x14] sm:$0xf]
  %v53 = vld [vmem:[%s0 + $0x18] sm:$0xf]
  %v54 = vld [vmem:[%s0 + $0x1c] sm:$0xf]
  %v56 = vlaneseq
  %v57 = vshrl.u32 %v56, 7
  %v58 = vsub.s32 0, %v57
  %v59 = vrot.slane %v46, %v58
  %v69 = vunpack.c.l.b16 %v47
  %v70 = vunpack.c.l.b16 %v48
  %v71 = vunpack.c.l.b16 %v49
  %v72 = vunpack.c.l.b16 %v50
  %v73 = vunpack.c.l.b16 %v51
  %v74 = vunpack.c.l.b16 %v52
  %v75 = vunpack.c.l.b16 %v53
  %v76 = vunpack.c.l.b16 %v54
  %v77 = vpack.c.b16 %v70, %v69
  %v78 = vpack.c.b16 %v72, %v71
  %v79 = vpack.c.b16 %v74, %v73
  %v80 = vpack.c.b16 %v76, %v75
  %v83 = vunpack.c.l.b16 %v40
  %v84 = vunpack.c.l.b16 %v41
  %v85 = vpack.c.b16 %v84, %v83
  %vm87 = vcmask 130048
  %v89 = vsel %vm87, %v77, 0
  %v92 = vsel %vm87, %v78, 0
  %v95 = vsel %vm87, %v79, 0
  %v98 = vsel %vm87, %v80, 0
  %100 = vmatprep.subr.bf16.mxu0 0
  %101 = vmatpush1.bf16.msra.mxu0 0
  %102 = vmatprep.subr.bf16.mxu0 0
  %103 = vmatpush1.bf16.msra.mxu0 0
  %104 = vmatprep.subr.bf16.mxu0 0
  %105 = vmatpush1.bf16.msra.mxu0 0
  %106 = vmatprep.subr.bf16.mxu0 0
  %107 = vmatpush1.bf16.msra.mxu0 0
  %108 = vmatprep.subr.bf16.mxu0 0
  %109 = vmatpush1.bf16.msra.mxu0 0
  %110 = vmatprep.subr.bf16.mxu0 0
  %111 = vmatpush1.bf16.msra.mxu0 0
  %112 = vmatprep.subr.bf16.mxu0 0
  %113 = vmatpush1.bf16.msra.mxu0 0
  %114 = vmatprep.subr.bf16.mxu0 0
  %115 = vmatpush1.bf16.msra.mxu0 %v85
  %116 = vmatprep.subr.bf16.mxu0 0
  %117 = vmatpush2.bf16.msra.mxu0 0
  %118 = vmatprep.subr.bf16.mxu0 0
  %119 = vmatpush2.bf16.msra.mxu0 0
  %120 = vmatprep.subr.bf16.mxu0 0
  %121 = vmatpush2.bf16.msra.mxu0 0
  %122 = vmatprep.subr.bf16.mxu0 0
  %123 = vmatpush2.bf16.msra.mxu0 0
  %124 = vmatprep.subr.bf16.mxu0 0
  %125 = vmatpush2.bf16.msra.mxu0 0
  %126 = vmatprep.subr.bf16.mxu0 0
  %127 = vmatpush2.bf16.msra.mxu0 0
  %128 = vmatprep.subr.bf16.mxu0 0
  %129 = vmatpush2.bf16.msra.mxu0 0
  %130 = vmatprep.subr.bf16.mxu0 0
  %131 = vmatpush2.bf16.msra.mxu0 0
  %132 = vmatprep.mubr.bf16.mxu0 0
  %133 = vmatmul.mubr.bf16.gmra.mxu0 %v89
  %v134 = vpop.f32.mrf.mxu0
  %v135 = vadd.f32 %v59, %v134
  %v136 = vpop.f32.mrf.mxu0
  %v137 = vpop.f32.mrf.mxu0
  %v138 = vadd.f32 %v59, %v137
  %v139 = vpop.f32.mrf.mxu0
  %140 = vmatprep.mubr.bf16.mxu0 0
  %141 = vmatmul.mubr.bf16.gmra.mxu0 %v92
  %v142 = vpop.f32.mrf.mxu0
  %v143 = vadd.f32 %v59, %v142
  %v144 = vpop.f32.mrf.mxu0
  %v145 = vpop.f32.mrf.mxu0
  %v146 = vadd.f32 %v59, %v145
  %v147 = vpop.f32.mrf.mxu0
  %148 = vmatprep.mubr.bf16.mxu0 0
  %149 = vmatmul.mubr.bf16.gmra.mxu0 %v95
  %v150 = vpop.f32.mrf.mxu0
  %v151 = vadd.f32 %v59, %v150
  %v152 = vpop.f32.mrf.mxu0
  %v153 = vpop.f32.mrf.mxu0
  %v154 = vadd.f32 %v59, %v153
  %v155 = vpop.f32.mrf.mxu0
  %156 = vmatprep.mubr.bf16.mxu0 0
  %157 = vmatmul.mubr.bf16.gmra.mxu0 %v98
  %v158 = vpop.f32.mrf.mxu0
  %v159 = vadd.f32 %v59, %v158
  %v160 = vpop.f32.mrf.mxu0
  %v161 = vpop.f32.mrf.mxu0
  %v162 = vadd.f32 %v59, %v161
  %v163 = vpop.f32.mrf.mxu0
  %164 = vdwg.mxu0
  %vm165 = vcmask 261120
  %166 = vst.msk [vmem:[#allocation3] sm:$0xff] %vm165, %v135
  %167 = vst.msk [vmem:[#allocation3 + $0x8] sm:$0xff] %vm165, %v138
  %168 = vst.msk [vmem:[#allocation3 + $0x10] sm:$0xff] %vm165, %v143
  %169 = vst.msk [vmem:[#allocation3 + $0x18] sm:$0xff] %vm165, %v146
  %170 = vst.msk [vmem:[#allocation3 + $0x20] sm:$0xff] %vm165, %v151
  %171 = vst.msk [vmem:[#allocation3 + $0x28] sm:$0xff] %vm165, %v154
  %172 = vst.msk [vmem:[#allocation3 + $0x30] sm:$0xff] %vm165, %v159
  %173 = vst.msk [vmem:[#allocation3 + $0x38] sm:$0xff] %vm165, %v162
  %v174 = vld [vmem:[#allocation2] sm:$0xff]
  %v175 = vld [vmem:[#allocation3] sm:$0xff]
  %v176 = vpack.c.bf16 %v174, %v174
  %v181 = vunpack.c.l.b16 %v42
  %v182 = vunpack.c.l.b16 %v43
  %v183 = vunpack.c.l.b16 %v44
  %v184 = vunpack.c.l.b16 %v45
  %v185 = vpack.c.b16 %v182, %v181
  %v186 = vpack.c.b16 %v184, %v183
  %v190 = vsel %vm165, %v176, 0
  %192 = vmatprep.subr.bf16.mxu0 0
  %193 = vmatpush1.bf16.msra.mxu0 0
  %194 = vmatprep.subr.bf16.mxu0 0
  %195 = vmatpush1.bf16.msra.mxu0 0
  %196 = vmatprep.subr.bf16.mxu0 0
  %197 = vmatpush1.bf16.msra.mxu0 0
  %198 = vmatprep.subr.bf16.mxu0 0
  %199 = vmatpush1.bf16.msra.mxu0 0
  %200 = vmatprep.subr.bf16.mxu0 0
  %201 = vmatpush1.bf16.msra.mxu0 0
  %202 = vmatprep.subr.bf16.mxu0 0
  %203 = vmatpush1.bf16.msra.mxu0 0
  %204 = vmatprep.subr.bf16.mxu0 0
  %205 = vmatpush1.bf16.msra.mxu0 %v186
  %206 = vmatprep.subr.bf16.mxu0 0
  %207 = vmatpush1.bf16.msra.mxu0 %v185
  %208 = vmatprep.subr.bf16.mxu0 0
  %209 = vmatpush2.bf16.msra.mxu0 0
  %210 = vmatprep.subr.bf16.mxu0 0
  %211 = vmatpush2.bf16.msra.mxu0 0
  %212 = vmatprep.subr.bf16.mxu0 0
  %213 = vmatpush2.bf16.msra.mxu0 0
  %214 = vmatprep.subr.bf16.mxu0 0
  %215 = vmatpush2.bf16.msra.mxu0 0
  %216 = vmatprep.subr.bf16.mxu0 0
  %217 = vmatpush2.bf16.msra.mxu0 0
  %218 = vmatprep.subr.bf16.mxu0 0
  %219 = vmatpush2.bf16.msra.mxu0 0
  %220 = vmatprep.subr.bf16.mxu0 0
  %221 = vmatpush2.bf16.msra.mxu0 0
  %222 = vmatprep.subr.bf16.mxu0 0
  %223 = vmatpush2.bf16.msra.mxu0 0
  %224 = vmatprep.mubr.bf16.mxu0 0
  %225 = vmatmul.mubr.bf16.gmra.mxu0 %v190
  %v226 = vpop.f32.mrf.mxu0
  %v227 = vadd.f32 0.0, %v226
  %v228 = vpop.f32.mrf.mxu0
  %v229 = vpop.f32.mrf.mxu0
  %v230 = vpop.f32.mrf.mxu0
  %231 = vdwg.mxu0
  %v232 = vadd.f32 %v175, %v227
  %v233 = vmax.f32 %v232, 0.0
  %v234 = vpack.c.bf16 %v233, %v233
  %vm235 = vcmask 257024
  %236 = vst.msk [vmem:[#allocation4] sm:$0xf] %vm235, %v234
  %s237 = scalar_lea.vmem [#allocation3], 8
  %v238 = vld [vmem:[%s237] sm:$0xff]
  %v240 = vsel %vm165, %v234, 0
  %242 = vmatprep.subr.bf16.mxu0 0
  %243 = vmatpush1.bf16.msra.mxu0 0
  %244 = vmatprep.subr.bf16.mxu0 0
  %245 = vmatpush1.bf16.msra.mxu0 0
  %246 = vmatprep.subr.bf16.mxu0 0
  %247 = vmatpush1.bf16.msra.mxu0 0
  %248 = vmatprep.subr.bf16.mxu0 0
  %249 = vmatpush1.bf16.msra.mxu0 0
  %250 = vmatprep.subr.bf16.mxu0 0
  %251 = vmatpush1.bf16.msra.mxu0 0
  %252 = vmatprep.subr.bf16.mxu0 0
  %253 = vmatpush1.bf16.msra.mxu0 0
  %254 = vmatprep.subr.bf16.mxu0 0
  %255 = vmatpush1.bf16.msra.mxu0 %v186
  %256 = vmatprep.subr.bf16.mxu0 0
  %257 = vmatpush1.bf16.msra.mxu0 %v185
  %258 = vmatprep.subr.bf16.mxu0 0
  %259 = vmatpush2.bf16.msra.mxu0 0
  %260 = vmatprep.subr.bf16.mxu0 0
  %261 = vmatpush2.bf16.msra.mxu0 0
  %262 = vmatprep.subr.bf16.mxu0 0
  %263 = vmatpush2.bf16.msra.mxu0 0
  %264 = vmatprep.subr.bf16.mxu0 0
  %265 = vmatpush2.bf16.msra.mxu0 0
  %266 = vmatprep.subr.bf16.mxu0 0
  %267 = vmatpush2.bf16.msra.mxu0 0
  %268 = vmatprep.subr.bf16.mxu0 0
  %269 = vmatpush2.bf16.msra.mxu0 0
  %270 = vmatprep.subr.bf16.mxu0 0
  %271 = vmatpush2.bf16.msra.mxu0 0
  %272 = vmatprep.subr.bf16.mxu0 0
  %273 = vmatpush2.bf16.msra.mxu0 0
  %274 = vmatprep.mubr.bf16.mxu0 0
  %275 = vmatmul.mubr.bf16.gmra.mxu0 %v240
  %v276 = vpop.f32.mrf.mxu0
  %v277 = vadd.f32 0.0, %v276
  %v278 = vpop.f32.mrf.mxu0
  %v279 = vpop.f32.mrf.mxu0
  %v280 = vpop.f32.mrf.mxu0
  %281 = vdwg.mxu0
  %v282 = vadd.f32 %v238, %v277
  %v283 = vmax.f32 %v282, 0.0
  %v284 = vpack.c.bf16 %v283, %v283
  %s285 = scalar_lea.vmem [#allocation4], 4
  %286 = vst.msk [vmem:[%s285] sm:$0xf] %vm235, %v284
  %s287 = scalar_lea.vmem [#allocation3], 16
  %v288 = vld [vmem:[%s287] sm:$0xff]
  %v290 = vsel %vm165, %v284, 0
  %292 = vmatprep.subr.bf16.mxu0 0
  %293 = vmatpush1.bf16.msra.mxu0 0
  %294 = vmatprep.subr.bf16.mxu0 0
  %295 = vmatpush1.bf16.msra.mxu0 0
  %296 = vmatprep.subr.bf16.mxu0 0
  %297 = vmatpush1.bf16.msra.mxu0 0
  %298 = vmatprep.subr.bf16.mxu0 0
  %299 = vmatpush1.bf16.msra.mxu0 0
  %300 = vmatprep.subr.bf16.mxu0 0
  %301 = vmatpush1.bf16.msra.mxu0 0
  %302 = vmatprep.subr.bf16.mxu0 0
  %303 = vmatpush1.bf16.msra.mxu0 0
  %304 = vmatprep.subr.bf16.mxu0 0
  %305 = vmatpush1.bf16.msra.mxu0 %v186
  %306 = vmatprep.subr.bf16.mxu0 0
  %307 = vmatpush1.bf16.msra.mxu0 %v185
  %308 = vmatprep.subr.bf16.mxu0 0
  %309 = vmatpush2.bf16.msra.mxu0 0
  %310 = vmatprep.subr.bf16.mxu0 0
  %311 = vmatpush2.bf16.msra.mxu0 0
  %312 = vmatprep.subr.bf16.mxu0 0
  %313 = vmatpush2.bf16.msra.mxu0 0
  %314 = vmatprep.subr.bf16.mxu0 0
  %315 = vmatpush2.bf16.msra.mxu0 0
  %316 = vmatprep.subr.bf16.mxu0 0
  %317 = vmatpush2.bf16.msra.mxu0 0
  %318 = vmatprep.subr.bf16.mxu0 0
  %319 = vmatpush2.bf16.msra.mxu0 0
  %320 = vmatprep.subr.bf16.mxu0 0
  %321 = vmatpush2.bf16.msra.mxu0 0
  %322 = vmatprep.subr.bf16.mxu0 0
  %323 = vmatpush2.bf16.msra.mxu0 0
  %324 = vmatprep.mubr.bf16.mxu0 0
  %325 = vmatmul.mubr.bf16.gmra.mxu0 %v290
  %v326 = vpop.f32.mrf.mxu0
  %v327 = vadd.f32 0.0, %v326
  %v328 = vpop.f32.mrf.mxu0
  %v329 = vpop.f32.mrf.mxu0
  %v330 = vpop.f32.mrf.mxu0
  %331 = vdwg.mxu0
  %v332 = vadd.f32 %v288, %v327
  %v333 = vmax.f32 %v332, 0.0
  %v334 = vpack.c.bf16 %v333, %v333
  %s335 = scalar_lea.vmem [#allocation4], 8
  %336 = vst.msk [vmem:[%s335] sm:$0xf] %vm235, %v334
  %s337 = scalar_lea.vmem [#allocation3], 24
  %v338 = vld [vmem:[%s337] sm:$0xff]
  %v340 = vsel %vm165, %v334, 0
  %342 = vmatprep.subr.bf16.mxu0 0
  %343 = vmatpush1.bf16.msra.mxu0 0
  %344 = vmatprep.subr.bf16.mxu0 0
  %345 = vmatpush1.bf16.msra.mxu0 0
  %346 = vmatprep.subr.bf16.mxu0 0
  %347 = vmatpush1.bf16.msra.mxu0 0
  %348 = vmatprep.subr.bf16.mxu0 0
  %349 = vmatpush1.bf16.msra.mxu0 0
  %350 = vmatprep.subr.bf16.mxu0 0
  %351 = vmatpush1.bf16.msra.mxu0 0
  %352 = vmatprep.subr.bf16.mxu0 0
  %353 = vmatpush1.bf16.msra.mxu0 0
  %354 = vmatprep.subr.bf16.mxu0 0
  %355 = vmatpush1.bf16.msra.mxu0 %v186
  %356 = vmatprep.subr.bf16.mxu0 0
  %357 = vmatpush1.bf16.msra.mxu0 %v185
  %358 = vmatprep.subr.bf16.mxu0 0
  %359 = vmatpush2.bf16.msra.mxu0 0
  %360 = vmatprep.subr.bf16.mxu0 0
  %361 = vmatpush2.bf16.msra.mxu0 0
  %362 = vmatprep.subr.bf16.mxu0 0
  %363 = vmatpush2.bf16.msra.mxu0 0
  %364 = vmatprep.subr.bf16.mxu0 0
  %365 = vmatpush2.bf16.msra.mxu0 0
  %366 = vmatprep.subr.bf16.mxu0 0
  %367 = vmatpush2.bf16.msra.mxu0 0
  %368 = vmatprep.subr.bf16.mxu0 0
  %369 = vmatpush2.bf16.msra.mxu0 0
  %370 = vmatprep.subr.bf16.mxu0 0
  %371 = vmatpush2.bf16.msra.mxu0 0
  %372 = vmatprep.subr.bf16.mxu0 0
  %373 = vmatpush2.bf16.msra.mxu0 0
  %374 = vmatprep.mubr.bf16.mxu0 0
  %375 = vmatmul.mubr.bf16.gmra.mxu0 %v340
  %v376 = vpop.f32.mrf.mxu0
  %v377 = vadd.f32 0.0, %v376
  %v378 = vpop.f32.mrf.mxu0
  %v379 = vpop.f32.mrf.mxu0
  %v380 = vpop.f32.mrf.mxu0
  %381 = vdwg.mxu0
  %v382 = vadd.f32 %v338, %v377
  %v383 = vmax.f32 %v382, 0.0
  %v384 = vpack.c.bf16 %v383, %v383
  %s385 = scalar_lea.vmem [#allocation4], 12
  %386 = vst.msk [vmem:[%s385] sm:$0xf] %vm235, %v384
  %s387 = scalar_lea.vmem [#allocation3], 32
  %v388 = vld [vmem:[%s387] sm:$0xff]
  %v390 = vsel %vm165, %v384, 0
  %392 = vmatprep.subr.bf16.mxu0 0
  %393 = vmatpush1.bf16.msra.mxu0 0
  %394 = vmatprep.subr.bf16.mxu0 0
  %395 = vmatpush1.bf16.msra.mxu0 0
  %396 = vmatprep.subr.bf16.mxu0 0
  %397 = vmatpush1.bf16.msra.mxu0 0
  %398 = vmatprep.subr.bf16.mxu0 0
  %399 = vmatpush1.bf16.msra.mxu0 0
  %400 = vmatprep.subr.bf16.mxu0 0
  %401 = vmatpush1.bf16.msra.mxu0 0
  %402 = vmatprep.subr.bf16.mxu0 0
  %403 = vmatpush1.bf16.msra.mxu0 0
  %404 = vmatprep.subr.bf16.mxu0 0
  %405 = vmatpush1.bf16.msra.mxu0 %v186
  %406 = vmatprep.subr.bf16.mxu0 0
  %407 = vmatpush1.bf16.msra.mxu0 %v185
  %408 = vmatprep.subr.bf16.mxu0 0
  %409 = vmatpush2.bf16.msra.mxu0 0
  %410 = vmatprep.subr.bf16.mxu0 0
  %411 = vmatpush2.bf16.msra.mxu0 0
  %412 = vmatprep.subr.bf16.mxu0 0
  %413 = vmatpush2.bf16.msra.mxu0 0
  %414 = vmatprep.subr.bf16.mxu0 0
  %415 = vmatpush2.bf16.msra.mxu0 0
  %416 = vmatprep.subr.bf16.mxu0 0
  %417 = vmatpush2.bf16.msra.mxu0 0
  %418 = vmatprep.subr.bf16.mxu0 0
  %419 = vmatpush2.bf16.msra.mxu0 0
  %420 = vmatprep.subr.bf16.mxu0 0
  %421 = vmatpush2.bf16.msra.mxu0 0
  %422 = vmatprep.subr.bf16.mxu0 0
  %423 = vmatpush2.bf16.msra.mxu0 0
  %424 = vmatprep.mubr.bf16.mxu0 0
  %425 = vmatmul.mubr.bf16.gmra.mxu0 %v390
  %v426 = vpop.f32.mrf.mxu0
  %v427 = vadd.f32 0.0, %v426
  %v428 = vpop.f32.mrf.mxu0
  %v429 = vpop.f32.mrf.mxu0
  %v430 = vpop.f32.mrf.mxu0
  %431 = vdwg.mxu0
  %v432 = vadd.f32 %v388, %v427
  %v433 = vmax.f32 %v432, 0.0
  %v434 = vpack.c.bf16 %v433, %v433
  %s435 = scalar_lea.vmem [#allocation4], 16
  %436 = vst.msk [vmem:[%s435] sm:$0xf] %vm235, %v434
  %s437 = scalar_lea.vmem [#allocation3], 40
  %v438 = vld [vmem:[%s437] sm:$0xff]
  %v440 = vsel %vm165, %v434, 0
  %442 = vmatprep.subr.bf16.mxu0 0
  %443 = vmatpush1.bf16.msra.mxu0 0
  %444 = vmatprep.subr.bf16.mxu0 0
  %445 = vmatpush1.bf16.msra.mxu0 0
  %446 = vmatprep.subr.bf16.mxu0 0
  %447 = vmatpush1.bf16.msra.mxu0 0
  %448 = vmatprep.subr.bf16.mxu0 0
  %449 = vmatpush1.bf16.msra.mxu0 0
  %450 = vmatprep.subr.bf16.mxu0 0
  %451 = vmatpush1.bf16.msra.mxu0 0
  %452 = vmatprep.subr.bf16.mxu0 0
  %453 = vmatpush1.bf16.msra.mxu0 0
  %454 = vmatprep.subr.bf16.mxu0 0
  %455 = vmatpush1.bf16.msra.mxu0 %v186
  %456 = vmatprep.subr.bf16.mxu0 0
  %457 = vmatpush1.bf16.msra.mxu0 %v185
  %458 = vmatprep.subr.bf16.mxu0 0
  %459 = vmatpush2.bf16.msra.mxu0 0
  %460 = vmatprep.subr.bf16.mxu0 0
  %461 = vmatpush2.bf16.msra.mxu0 0
  %462 = vmatprep.subr.bf16.mxu0 0
  %463 = vmatpush2.bf16.msra.mxu0 0
  %464 = vmatprep.subr.bf16.mxu0 0
  %465 = vmatpush2.bf16.msra.mxu0 0
  %466 = vmatprep.subr.bf16.mxu0 0
  %467 = vmatpush2.bf16.msra.mxu0 0
  %468 = vmatprep.subr.bf16.mxu0 0
  %469 = vmatpush2.bf16.msra.mxu0 0
  %470 = vmatprep.subr.bf16.mxu0 0
  %471 = vmatpush2.bf16.msra.mxu0 0
  %472 = vmatprep.subr.bf16.mxu0 0
  %473 = vmatpush2.bf16.msra.mxu0 0
  %474 = vmatprep.mubr.bf16.mxu0 0
  %475 = vmatmul.mubr.bf16.gmra.mxu0 %v440
  %v476 = vpop.f32.mrf.mxu0
  %v477 = vadd.f32 0.0, %v476
  %v478 = vpop.f32.mrf.mxu0
  %v479 = vpop.f32.mrf.mxu0
  %v480 = vpop.f32.mrf.mxu0
  %481 = vdwg.mxu0
  %v482 = vadd.f32 %v438, %v477
  %v483 = vmax.f32 %v482, 0.0
  %v484 = vpack.c.bf16 %v483, %v483
  %s485 = scalar_lea.vmem [#allocation4], 20
  %486 = vst.msk [vmem:[%s485] sm:$0xf] %vm235, %v484
  %s487 = scalar_lea.vmem [#allocation3], 48
  %v488 = vld [vmem:[%s487] sm:$0xff]
  %v490 = vsel %vm165, %v484, 0
  %492 = vmatprep.subr.bf16.mxu0 0
  %493 = vmatpush1.bf16.msra.mxu0 0
  %494 = vmatprep.subr.bf16.mxu0 0
  %495 = vmatpush1.bf16.msra.mxu0 0
  %496 = vmatprep.subr.bf16.mxu0 0
  %497 = vmatpush1.bf16.msra.mxu0 0
  %498 = vmatprep.subr.bf16.mxu0 0
  %499 = vmatpush1.bf16.msra.mxu0 0
  %500 = vmatprep.subr.bf16.mxu0 0
  %501 = vmatpush1.bf16.msra.mxu0 0
  %502 = vmatprep.subr.bf16.mxu0 0
  %503 = vmatpush1.bf16.msra.mxu0 0
  %504 = vmatprep.subr.bf16.mxu0 0
  %505 = vmatpush1.bf16.msra.mxu0 %v186
  %506 = vmatprep.subr.bf16.mxu0 0
  %507 = vmatpush1.bf16.msra.mxu0 %v185
  %508 = vmatprep.subr.bf16.mxu0 0
  %509 = vmatpush2.bf16.msra.mxu0 0
  %510 = vmatprep.subr.bf16.mxu0 0
  %511 = vmatpush2.bf16.msra.mxu0 0
  %512 = vmatprep.subr.bf16.mxu0 0
  %513 = vmatpush2.bf16.msra.mxu0 0
  %514 = vmatprep.subr.bf16.mxu0 0
  %515 = vmatpush2.bf16.msra.mxu0 0
  %516 = vmatprep.subr.bf16.mxu0 0
  %517 = vmatpush2.bf16.msra.mxu0 0
  %518 = vmatprep.subr.bf16.mxu0 0
  %519 = vmatpush2.bf16.msra.mxu0 0
  %520 = vmatprep.subr.bf16.mxu0 0
  %521 = vmatpush2.bf16.msra.mxu0 0
  %522 = vmatprep.subr.bf16.mxu0 0
  %523 = vmatpush2.bf16.msra.mxu0 0
  %524 = vmatprep.mubr.bf16.mxu0 0
  %525 = vmatmul.mubr.bf16.gmra.mxu0 %v490
  %v526 = vpop.f32.mrf.mxu0
  %v527 = vadd.f32 0.0, %v526
  %v528 = vpop.f32.mrf.mxu0
  %v529 = vpop.f32.mrf.mxu0
  %v530 = vpop.f32.mrf.mxu0
  %531 = vdwg.mxu0
  %v532 = vadd.f32 %v488, %v527
  %v533 = vmax.f32 %v532, 0.0
  %v534 = vpack.c.bf16 %v533, %v533
  %s535 = scalar_lea.vmem [#allocation4], 24
  %536 = vst.msk [vmem:[%s535] sm:$0xf] %vm235, %v534
  %s537 = scalar_lea.vmem [#allocation3], 56
  %v538 = vld [vmem:[%s537] sm:$0xff]
  %v540 = vsel %vm165, %v534, 0
  %542 = vmatprep.subr.bf16.mxu0 0
  %543 = vmatpush1.bf16.msra.mxu0 0
  %544 = vmatprep.subr.bf16.mxu0 0
  %545 = vmatpush1.bf16.msra.mxu0 0
  %546 = vmatprep.subr.bf16.mxu0 0
  %547 = vmatpush1.bf16.msra.mxu0 0
  %548 = vmatprep.subr.bf16.mxu0 0
  %549 = vmatpush1.bf16.msra.mxu0 0
  %550 = vmatprep.subr.bf16.mxu0 0
  %551 = vmatpush1.bf16.msra.mxu0 0
  %552 = vmatprep.subr.bf16.mxu0 0
  %553 = vmatpush1.bf16.msra.mxu0 0
  %554 = vmatprep.subr.bf16.mxu0 0
  %555 = vmatpush1.bf16.msra.mxu0 %v186
  %556 = vmatprep.subr.bf16.mxu0 0
  %557 = vmatpush1.bf16.msra.mxu0 %v185
  %558 = vmatprep.subr.bf16.mxu0 0
  %559 = vmatpush2.bf16.msra.mxu0 0
  %560 = vmatprep.subr.bf16.mxu0 0
  %561 = vmatpush2.bf16.msra.mxu0 0
  %562 = vmatprep.subr.bf16.mxu0 0
  %563 = vmatpush2.bf16.msra.mxu0 0
  %564 = vmatprep.subr.bf16.mxu0 0
  %565 = vmatpush2.bf16.msra.mxu0 0
  %566 = vmatprep.subr.bf16.mxu0 0
  %567 = vmatpush2.bf16.msra.mxu0 0
  %568 = vmatprep.subr.bf16.mxu0 0
  %569 = vmatpush2.bf16.msra.mxu0 0
  %570 = vmatprep.subr.bf16.mxu0 0
  %571 = vmatpush2.bf16.msra.mxu0 0
  %572 = vmatprep.subr.bf16.mxu0 0
  %573 = vmatpush2.bf16.msra.mxu0 0
  %574 = vmatprep.mubr.bf16.mxu0 0
  %575 = vmatmul.mubr.bf16.gmra.mxu0 %v540
  %v576 = vpop.f32.mrf.mxu0
  %v577 = vadd.f32 0.0, %v576
  %v578 = vpop.f32.mrf.mxu0
  %v579 = vpop.f32.mrf.mxu0
  %v580 = vpop.f32.mrf.mxu0
  %581 = vdwg.mxu0
  %v582 = vadd.f32 %v538, %v577
  %v583 = vmax.f32 %v582, 0.0
  %v584 = vpack.c.bf16 %v583, %v583
  %s585 = scalar_lea.vmem [#allocation4], 28
  %586 = vst.msk [vmem:[%s585] sm:$0xf] %vm235, %v584
  %587 = vst.msk [vmem:[#allocation2] sm:$0xff] %vm165, %v583
  %v588 = vld [vmem:[%s4] sm:$0xf]
  %v589 = vld [vmem:[%s4 + $0x4] sm:$0xf]
  %v590 = vld [vmem:[%s4 + $0x8] sm:$0xf]
  %v591 = vld [vmem:[%s4 + $0xc] sm:$0xf]
  %v592 = vld [vmem:[%s5] sm:$0xf]
  %v593 = vld [vmem:[%s5 + $0x4] sm:$0xf]
  %v594 = vld [vmem:[%s5 + $0x8] sm:$0xf]
  %v595 = vld [vmem:[%s5 + $0xc] sm:$0xf]
  %v596 = vld [vmem:[%s6] sm:$0x1]
  %v597 = vld [vmem:[#allocation4] sm:$0xf]
  %v598 = vld [vmem:[#allocation4 + $0x4] sm:$0xf]
  %v599 = vld [vmem:[#allocation4 + $0x8] sm:$0xf]
  %v600 = vld [vmem:[#allocation4 + $0xc] sm:$0xf]
  %v601 = vld [vmem:[#allocation4 + $0x10] sm:$0xf]
  %v602 = vld [vmem:[#allocation4 + $0x14] sm:$0xf]
  %v603 = vld [vmem:[#allocation4 + $0x18] sm:$0xf]
  %v604 = vld [vmem:[#allocation4 + $0x1c] sm:$0xf]
  %v606 = vlaneseq
  %v607 = vshrl.u32 %v606, 7
  %v608 = vsub.s32 0, %v607
  %v609 = vrot.slane %v596, %v608
  %v619 = vunpack.c.l.b16 %v597
  %v620 = vunpack.c.l.b16 %v598
  %v621 = vunpack.c.l.b16 %v599
  %v622 = vunpack.c.l.b16 %v600
  %v623 = vunpack.c.l.b16 %v601
  %v624 = vunpack.c.l.b16 %v602
  %v625 = vunpack.c.l.b16 %v603
  %v626 = vunpack.c.l.b16 %v604
  %v627 = vpack.c.b16 %v620, %v619
  %v628 = vpack.c.b16 %v622, %v621
  %v629 = vpack.c.b16 %v624, %v623
  %v630 = vpack.c.b16 %v626, %v625
  %v635 = vunpack.c.l.b16 %v588
  %v636 = vunpack.c.l.b16 %v589
  %v637 = vunpack.c.l.b16 %v590
  %v638 = vunpack.c.l.b16 %v591
  %v639 = vpack.c.b16 %v636, %v635
  %v640 = vpack.c.b16 %v638, %v637
  %v644 = vsel %vm165, %v627, 0
  %v647 = vsel %vm165, %v628, 0
  %v650 = vsel %vm165, %v629, 0
  %v653 = vsel %vm165, %v630, 0
  %655 = vmatprep.subr.bf16.mxu0 0
  %656 = vmatpush1.bf16.msra.mxu0 0
  %657 = vmatprep.subr.bf16.mxu0 0
  %658 = vmatpush1.bf16.msra.mxu0 0
  %659 = vmatprep.subr.bf16.mxu0 0
  %660 = vmatpush1.bf16.msra.mxu0 0
  %661 = vmatprep.subr.bf16.mxu0 0
  %662 = vmatpush1.bf16.msra.mxu0 0
  %663 = vmatprep.subr.bf16.mxu0 0
  %664 = vmatpush1.bf16.msra.mxu0 0
  %665 = vmatprep.subr.bf16.mxu0 0
  %666 = vmatpush1.bf16.msra.mxu0 0
  %667 = vmatprep.subr.bf16.mxu0 0
  %668 = vmatpush1.bf16.msra.mxu0 %v640
  %669 = vmatprep.subr.bf16.mxu0 0
  %670 = vmatpush1.bf16.msra.mxu0 %v639
  %671 = vmatprep.subr.bf16.mxu0 0
  %672 = vmatpush2.bf16.msra.mxu0 0
  %673 = vmatprep.subr.bf16.mxu0 0
  %674 = vmatpush2.bf16.msra.mxu0 0
  %675 = vmatprep.subr.bf16.mxu0 0
  %676 = vmatpush2.bf16.msra.mxu0 0
  %677 = vmatprep.subr.bf16.mxu0 0
  %678 = vmatpush2.bf16.msra.mxu0 0
  %679 = vmatprep.subr.bf16.mxu0 0
  %680 = vmatpush2.bf16.msra.mxu0 0
  %681 = vmatprep.subr.bf16.mxu0 0
  %682 = vmatpush2.bf16.msra.mxu0 0
  %683 = vmatprep.subr.bf16.mxu0 0
  %684 = vmatpush2.bf16.msra.mxu0 0
  %685 = vmatprep.subr.bf16.mxu0 0
  %686 = vmatpush2.bf16.msra.mxu0 0
  %687 = vmatprep.mubr.bf16.mxu0 0
  %688 = vmatmul.mubr.bf16.gmra.mxu0 %v644
  %v689 = vpop.f32.mrf.mxu0
  %v690 = vadd.f32 %v609, %v689
  %v691 = vpop.f32.mrf.mxu0
  %v692 = vpop.f32.mrf.mxu0
  %v693 = vadd.f32 %v609, %v692
  %v694 = vpop.f32.mrf.mxu0
  %695 = vmatprep.mubr.bf16.mxu0 0
  %696 = vmatmul.mubr.bf16.gmra.mxu0 %v647
  %v697 = vpop.f32.mrf.mxu0
  %v698 = vadd.f32 %v609, %v697
  %v699 = vpop.f32.mrf.mxu0
  %v700 = vpop.f32.mrf.mxu0
  %v701 = vadd.f32 %v609, %v700
  %v702 = vpop.f32.mrf.mxu0
  %703 = vmatprep.mubr.bf16.mxu0 0
  %704 = vmatmul.mubr.bf16.gmra.mxu0 %v650
  %v705 = vpop.f32.mrf.mxu0
  %v706 = vadd.f32 %v609, %v705
  %v707 = vpop.f32.mrf.mxu0
  %v708 = vpop.f32.mrf.mxu0
  %v709 = vadd.f32 %v609, %v708
  %v710 = vpop.f32.mrf.mxu0
  %711 = vmatprep.mubr.bf16.mxu0 0
  %712 = vmatmul.mubr.bf16.gmra.mxu0 %v653
  %v713 = vpop.f32.mrf.mxu0
  %v714 = vadd.f32 %v609, %v713
  %v715 = vpop.f32.mrf.mxu0
  %v716 = vpop.f32.mrf.mxu0
  %v717 = vadd.f32 %v609, %v716
  %v718 = vpop.f32.mrf.mxu0
  %719 = vdwg.mxu0
  %720 = vst.msk [vmem:[#allocation3] sm:$0xff] %vm165, %v690
  %721 = vst.msk [vmem:[#allocation3 + $0x8] sm:$0xff] %vm165, %v693
  %722 = vst.msk [vmem:[#allocation3 + $0x10] sm:$0xff] %vm165, %v698
  %723 = vst.msk [vmem:[#allocation3 + $0x18] sm:$0xff] %vm165, %v701
  %724 = vst.msk [vmem:[#allocation3 + $0x20] sm:$0xff] %vm165, %v706
  %725 = vst.msk [vmem:[#allocation3 + $0x28] sm:$0xff] %vm165, %v709
  %726 = vst.msk [vmem:[#allocation3 + $0x30] sm:$0xff] %vm165, %v714
  %727 = vst.msk [vmem:[#allocation3 + $0x38] sm:$0xff] %vm165, %v717
  %s728 = scalar_lea.vmem [#allocation2], 8
  %v729 = vld [vmem:[%s728] sm:$0xff]
  %v730 = vld [vmem:[#allocation3] sm:$0xff]
  %v731 = vpack.c.bf16 %v729, %v729
  %v736 = vunpack.c.l.b16 %v592
  %v737 = vunpack.c.l.b16 %v593
  %v738 = vunpack.c.l.b16 %v594
  %v739 = vunpack.c.l.b16 %v595
  %v740 = vpack.c.b16 %v737, %v736
  %v741 = vpack.c.b16 %v739, %v738
  %v745 = vsel %vm165, %v731, 0
  %747 = vmatprep.subr.bf16.mxu0 0
  %748 = vmatpush1.bf16.msra.mxu0 0
  %749 = vmatprep.subr.bf16.mxu0 0
  %750 = vmatpush1.bf16.msra.mxu0 0
  %751 = vmatprep.subr.bf16.mxu0 0
  %752 = vmatpush1.bf16.msra.mxu0 0
  %753 = vmatprep.subr.bf16.mxu0 0
  %754 = vmatpush1.bf16.msra.mxu0 0
  %755 = vmatprep.subr.bf16.mxu0 0
  %756 = vmatpush1.bf16.msra.mxu0 0
  %757 = vmatprep.subr.bf16.mxu0 0
  %758 = vmatpush1.bf16.msra.mxu0 0
  %759 = vmatprep.subr.bf16.mxu0 0
  %760 = vmatpush1.bf16.msra.mxu0 %v741
  %761 = vmatprep.subr.bf16.mxu0 0
  %762 = vmatpush1.bf16.msra.mxu0 %v740
  %763 = vmatprep.subr.bf16.mxu0 0
  %764 = vmatpush2.bf16.msra.mxu0 0
  %765 = vmatprep.subr.bf16.mxu0 0
  %766 = vmatpush2.bf16.msra.mxu0 0
  %767 = vmatprep.subr.bf16.mxu0 0
  %768 = vmatpush2.bf16.msra.mxu0 0
  %769 = vmatprep.subr.bf16.mxu0 0
  %770 = vmatpush2.bf16.msra.mxu0 0
  %771 = vmatprep.subr.bf16.mxu0 0
  %772 = vmatpush2.bf16.msra.mxu0 0
  %773 = vmatprep.subr.bf16.mxu0 0
  %774 = vmatpush2.bf16.msra.mxu0 0
  %775 = vmatprep.subr.bf16.mxu0 0
  %776 = vmatpush2.bf16.msra.mxu0 0
  %777 = vmatprep.subr.bf16.mxu0 0
  %778 = vmatpush2.bf16.msra.mxu0 0
  %779 = vmatprep.mubr.bf16.mxu0 0
  %780 = vmatmul.mubr.bf16.gmra.mxu0 %v745
  %v781 = vpop.f32.mrf.mxu0
  %v782 = vadd.f32 0.0, %v781
  %v783 = vpop.f32.mrf.mxu0
  %v784 = vpop.f32.mrf.mxu0
  %v785 = vpop.f32.mrf.mxu0
  %786 = vdwg.mxu0
  %v787 = vadd.f32 %v730, %v782
  %v788 = vmax.f32 %v787, 0.0
  %v789 = vld [vmem:[%s237] sm:$0xff]
  %v790 = vpack.c.bf16 %v788, %v788
  %v792 = vsel %vm165, %v790, 0
  %794 = vmatprep.subr.bf16.mxu0 0
  %795 = vmatpush1.bf16.msra.mxu0 0
  %796 = vmatprep.subr.bf16.mxu0 0
  %797 = vmatpush1.bf16.msra.mxu0 0
  %798 = vmatprep.subr.bf16.mxu0 0
  %799 = vmatpush1.bf16.msra.mxu0 0
  %800 = vmatprep.subr.bf16.mxu0 0
  %801 = vmatpush1.bf16.msra.mxu0 0
  %802 = vmatprep.subr.bf16.mxu0 0
  %803 = vmatpush1.bf16.msra.mxu0 0
  %804 = vmatprep.subr.bf16.mxu0 0
  %805 = vmatpush1.bf16.msra.mxu0 0
  %806 = vmatprep.subr.bf16.mxu0 0
  %807 = vmatpush1.bf16.msra.mxu0 %v741
  %808 = vmatprep.subr.bf16.mxu0 0
  %809 = vmatpush1.bf16.msra.mxu0 %v740
  %810 = vmatprep.subr.bf16.mxu0 0
  %811 = vmatpush2.bf16.msra.mxu0 0
  %812 = vmatprep.subr.bf16.mxu0 0
  %813 = vmatpush2.bf16.msra.mxu0 0
  %814 = vmatprep.subr.bf16.mxu0 0
  %815 = vmatpush2.bf16.msra.mxu0 0
  %816 = vmatprep.subr.bf16.mxu0 0
  %817 = vmatpush2.bf16.msra.mxu0 0
  %818 = vmatprep.subr.bf16.mxu0 0
  %819 = vmatpush2.bf16.msra.mxu0 0
  %820 = vmatprep.subr.bf16.mxu0 0
  %821 = vmatpush2.bf16.msra.mxu0 0
  %822 = vmatprep.subr.bf16.mxu0 0
  %823 = vmatpush2.bf16.msra.mxu0 0
  %824 = vmatprep.subr.bf16.mxu0 0
  %825 = vmatpush2.bf16.msra.mxu0 0
  %826 = vmatprep.mubr.bf16.mxu0 0
  %827 = vmatmul.mubr.bf16.gmra.mxu0 %v792
  %v828 = vpop.f32.mrf.mxu0
  %v829 = vadd.f32 0.0, %v828
  %v830 = vpop.f32.mrf.mxu0
  %v831 = vpop.f32.mrf.mxu0
  %v832 = vpop.f32.mrf.mxu0
  %833 = vdwg.mxu0
  %v834 = vadd.f32 %v789, %v829
  %v835 = vmax.f32 %v834, 0.0
  %v836 = vld [vmem:[%s287] sm:$0xff]
  %v837 = vpack.c.bf16 %v835, %v835
  %v839 = vsel %vm165, %v837, 0
  %841 = vmatprep.subr.bf16.mxu0 0
  %842 = vmatpush1.bf16.msra.mxu0 0
  %843 = vmatprep.subr.bf16.mxu0 0
  %844 = vmatpush1.bf16.msra.mxu0 0
  %845 = vmatprep.subr.bf16.mxu0 0
  %846 = vmatpush1.bf16.msra.mxu0 0
  %847 = vmatprep.subr.bf16.mxu0 0
  %848 = vmatpush1.bf16.msra.mxu0 0
  %849 = vmatprep.subr.bf16.mxu0 0
  %850 = vmatpush1.bf16.msra.mxu0 0
  %851 = vmatprep.subr.bf16.mxu0 0
  %852 = vmatpush1.bf16.msra.mxu0 0
  %853 = vmatprep.subr.bf16.mxu0 0
  %854 = vmatpush1.bf16.msra.mxu0 %v741
  %855 = vmatprep.subr.bf16.mxu0 0
  %856 = vmatpush1.bf16.msra.mxu0 %v740
  %857 = vmatprep.subr.bf16.mxu0 0
  %858 = vmatpush2.bf16.msra.mxu0 0
  %859 = vmatprep.subr.bf16.mxu0 0
  %860 = vmatpush2.bf16.msra.mxu0 0
  %861 = vmatprep.subr.bf16.mxu0 0
  %862 = vmatpush2.bf16.msra.mxu0 0
  %863 = vmatprep.subr.bf16.mxu0 0
  %864 = vmatpush2.bf16.msra.mxu0 0
  %865 = vmatprep.subr.bf16.mxu0 0
  %866 = vmatpush2.bf16.msra.mxu0 0
  %867 = vmatprep.subr.bf16.mxu0 0
  %868 = vmatpush2.bf16.msra.mxu0 0
  %869 = vmatprep.subr.bf16.mxu0 0
  %870 = vmatpush2.bf16.msra.mxu0 0
  %871 = vmatprep.subr.bf16.mxu0 0
  %872 = vmatpush2.bf16.msra.mxu0 0
  %873 = vmatprep.mubr.bf16.mxu0 0
  %874 = vmatmul.mubr.bf16.gmra.mxu0 %v839
  %v875 = vpop.f32.mrf.mxu0
  %v876 = vadd.f32 0.0, %v875
  %v877 = vpop.f32.mrf.mxu0
  %v878 = vpop.f32.mrf.mxu0
  %v879 = vpop.f32.mrf.mxu0
  %880 = vdwg.mxu0
  %v881 = vadd.f32 %v836, %v876
  %v882 = vmax.f32 %v881, 0.0
  %v883 = vld [vmem:[%s337] sm:$0xff]
  %v884 = vpack.c.bf16 %v882, %v882
  %v886 = vsel %vm165, %v884, 0
  %888 = vmatprep.subr.bf16.mxu0 0
  %889 = vmatpush1.bf16.msra.mxu0 0
  %890 = vmatprep.subr.bf16.mxu0 0
  %891 = vmatpush1.bf16.msra.mxu0 0
  %892 = vmatprep.subr.bf16.mxu0 0
  %893 = vmatpush1.bf16.msra.mxu0 0
  %894 = vmatprep.subr.bf16.mxu0 0
  %895 = vmatpush1.bf16.msra.mxu0 0
  %896 = vmatprep.subr.bf16.mxu0 0
  %897 = vmatpush1.bf16.msra.mxu0 0
  %898 = vmatprep.subr.bf16.mxu0 0
  %899 = vmatpush1.bf16.msra.mxu0 0
  %900 = vmatprep.subr.bf16.mxu0 0
  %901 = vmatpush1.bf16.msra.mxu0 %v741
  %902 = vmatprep.subr.bf16.mxu0 0
  %903 = vmatpush1.bf16.msra.mxu0 %v740
  %904 = vmatprep.subr.bf16.mxu0 0
  %905 = vmatpush2.bf16.msra.mxu0 0
  %906 = vmatprep.subr.bf16.mxu0 0
  %907 = vmatpush2.bf16.msra.mxu0 0
  %908 = vmatprep.subr.bf16.mxu0 0
  %909 = vmatpush2.bf16.msra.mxu0 0
  %910 = vmatprep.subr.bf16.mxu0 0
  %911 = vmatpush2.bf16.msra.mxu0 0
  %912 = vmatprep.subr.bf16.mxu0 0
  %913 = vmatpush2.bf16.msra.mxu0 0
  %914 = vmatprep.subr.bf16.mxu0 0
  %915 = vmatpush2.bf16.msra.mxu0 0
  %916 = vmatprep.subr.bf16.mxu0 0
  %917 = vmatpush2.bf16.msra.mxu0 0
  %918 = vmatprep.subr.bf16.mxu0 0
  %919 = vmatpush2.bf16.msra.mxu0 0
  %920 = vmatprep.mubr.bf16.mxu0 0
  %921 = vmatmul.mubr.bf16.gmra.mxu0 %v886
  %v922 = vpop.f32.mrf.mxu0
  %v923 = vadd.f32 0.0, %v922
  %v924 = vpop.f32.mrf.mxu0
  %v925 = vpop.f32.mrf.mxu0
  %v926 = vpop.f32.mrf.mxu0
  %927 = vdwg.mxu0
  %v928 = vadd.f32 %v883, %v923
  %v929 = vmax.f32 %v928, 0.0
  %v930 = vld [vmem:[%s387] sm:$0xff]
  %v931 = vpack.c.bf16 %v929, %v929
  %v933 = vsel %vm165, %v931, 0
  %935 = vmatprep.subr.bf16.mxu0 0
  %936 = vmatpush1.bf16.msra.mxu0 0
  %937 = vmatprep.subr.bf16.mxu0 0
  %938 = vmatpush1.bf16.msra.mxu0 0
  %939 = vmatprep.subr.bf16.mxu0 0
  %940 = vmatpush1.bf16.msra.mxu0 0
  %941 = vmatprep.subr.bf16.mxu0 0
  %942 = vmatpush1.bf16.msra.mxu0 0
  %943 = vmatprep.subr.bf16.mxu0 0
  %944 = vmatpush1.bf16.msra.mxu0 0
  %945 = vmatprep.subr.bf16.mxu0 0
  %946 = vmatpush1.bf16.msra.mxu0 0
  %947 = vmatprep.subr.bf16.mxu0 0
  %948 = vmatpush1.bf16.msra.mxu0 %v741
  %949 = vmatprep.subr.bf16.mxu0 0
  %950 = vmatpush1.bf16.msra.mxu0 %v740
  %951 = vmatprep.subr.bf16.mxu0 0
  %952 = vmatpush2.bf16.msra.mxu0 0
  %953 = vmatprep.subr.bf16.mxu0 0
  %954 = vmatpush2.bf16.msra.mxu0 0
  %955 = vmatprep.subr.bf16.mxu0 0
  %956 = vmatpush2.bf16.msra.mxu0 0
  %957 = vmatprep.subr.bf16.mxu0 0
  %958 = vmatpush2.bf16.msra.mxu0 0
  %959 = vmatprep.subr.bf16.mxu0 0
  %960 = vmatpush2.bf16.msra.mxu0 0
  %961 = vmatprep.subr.bf16.mxu0 0
  %962 = vmatpush2.bf16.msra.mxu0 0
  %963 = vmatprep.subr.bf16.mxu0 0
  %964 = vmatpush2.bf16.msra.mxu0 0
  %965 = vmatprep.subr.bf16.mxu0 0
  %966 = vmatpush2.bf16.msra.mxu0 0
  %967 = vmatprep.mubr.bf16.mxu0 0
  %968 = vmatmul.mubr.bf16.gmra.mxu0 %v933
  %v969 = vpop.f32.mrf.mxu0
  %v970 = vadd.f32 0.0, %v969
  %v971 = vpop.f32.mrf.mxu0
  %v972 = vpop.f32.mrf.mxu0
  %v973 = vpop.f32.mrf.mxu0
  %974 = vdwg.mxu0
  %v975 = vadd.f32 %v930, %v970
  %v976 = vmax.f32 %v975, 0.0
  %v977 = vld [vmem:[%s437] sm:$0xff]
  %v978 = vpack.c.bf16 %v976, %v976
  %v980 = vsel %vm165, %v978, 0
  %982 = vmatprep.subr.bf16.mxu0 0
  %983 = vmatpush1.bf16.msra.mxu0 0
  %984 = vmatprep.subr.bf16.mxu0 0
  %985 = vmatpush1.bf16.msra.mxu0 0
  %986 = vmatprep.subr.bf16.mxu0 0
  %987 = vmatpush1.bf16.msra.mxu0 0
  %988 = vmatprep.subr.bf16.mxu0 0
  %989 = vmatpush1.bf16.msra.mxu0 0
  %990 = vmatprep.subr.bf16.mxu0 0
  %991 = vmatpush1.bf16.msra.mxu0 0
  %992 = vmatprep.subr.bf16.mxu0 0
  %993 = vmatpush1.bf16.msra.mxu0 0
  %994 = vmatprep.subr.bf16.mxu0 0
  %995 = vmatpush1.bf16.msra.mxu0 %v741
  %996 = vmatprep.subr.bf16.mxu0 0
  %997 = vmatpush1.bf16.msra.mxu0 %v740
  %998 = vmatprep.subr.bf16.mxu0 0
  %999 = vmatpush2.bf16.msra.mxu0 0
  %1000 = vmatprep.subr.bf16.mxu0 0
  %1001 = vmatpush2.bf16.msra.mxu0 0
  %1002 = vmatprep.subr.bf16.mxu0 0
  %1003 = vmatpush2.bf16.msra.mxu0 0
  %1004 = vmatprep.subr.bf16.mxu0 0
  %1005 = vmatpush2.bf16.msra.mxu0 0
  %1006 = vmatprep.subr.bf16.mxu0 0
  %1007 = vmatpush2.bf16.msra.mxu0 0
  %1008 = vmatprep.subr.bf16.mxu0 0
  %1009 = vmatpush2.bf16.msra.mxu0 0
  %1010 = vmatprep.subr.bf16.mxu0 0
  %1011 = vmatpush2.bf16.msra.mxu0 0
  %1012 = vmatprep.subr.bf16.mxu0 0
  %1013 = vmatpush2.bf16.msra.mxu0 0
  %1014 = vmatprep.mubr.bf16.mxu0 0
  %1015 = vmatmul.mubr.bf16.gmra.mxu0 %v980
  %v1016 = vpop.f32.mrf.mxu0
  %v1017 = vadd.f32 0.0, %v1016
  %v1018 = vpop.f32.mrf.mxu0
  %v1019 = vpop.f32.mrf.mxu0
  %v1020 = vpop.f32.mrf.mxu0
  %1021 = vdwg.mxu0
  %v1022 = vadd.f32 %v977, %v1017
  %v1023 = vmax.f32 %v1022, 0.0
  %v1024 = vld [vmem:[%s487] sm:$0xff]
  %v1025 = vpack.c.bf16 %v1023, %v1023
  %v1027 = vsel %vm165, %v1025, 0
  %1029 = vmatprep.subr.bf16.mxu0 0
  %1030 = vmatpush1.bf16.msra.mxu0 0
  %1031 = vmatprep.subr.bf16.mxu0 0
  %1032 = vmatpush1.bf16.msra.mxu0 0
  %1033 = vmatprep.subr.bf16.mxu0 0
  %1034 = vmatpush1.bf16.msra.mxu0 0
  %1035 = vmatprep.subr.bf16.mxu0 0
  %1036 = vmatpush1.bf16.msra.mxu0 0
  %1037 = vmatprep.subr.bf16.mxu0 0
  %1038 = vmatpush1.bf16.msra.mxu0 0
  %1039 = vmatprep.subr.bf16.mxu0 0
  %1040 = vmatpush1.bf16.msra.mxu0 0
  %1041 = vmatprep.subr.bf16.mxu0 0
  %1042 = vmatpush1.bf16.msra.mxu0 %v741
  %1043 = vmatprep.subr.bf16.mxu0 0
  %1044 = vmatpush1.bf16.msra.mxu0 %v740
  %1045 = vmatprep.subr.bf16.mxu0 0
  %1046 = vmatpush2.bf16.msra.mxu0 0
  %1047 = vmatprep.subr.bf16.mxu0 0
  %1048 = vmatpush2.bf16.msra.mxu0 0
  %1049 = vmatprep.subr.bf16.mxu0 0
  %1050 = vmatpush2.bf16.msra.mxu0 0
  %1051 = vmatprep.subr.bf16.mxu0 0
  %1052 = vmatpush2.bf16.msra.mxu0 0
  %1053 = vmatprep.subr.bf16.mxu0 0
  %1054 = vmatpush2.bf16.msra.mxu0 0
  %1055 = vmatprep.subr.bf16.mxu0 0
  %1056 = vmatpush2.bf16.msra.mxu0 0
  %1057 = vmatprep.subr.bf16.mxu0 0
  %1058 = vmatpush2.bf16.msra.mxu0 0
  %1059 = vmatprep.subr.bf16.mxu0 0
  %1060 = vmatpush2.bf16.msra.mxu0 0
  %1061 = vmatprep.mubr.bf16.mxu0 0
  %1062 = vmatmul.mubr.bf16.gmra.mxu0 %v1027
  %v1063 = vpop.f32.mrf.mxu0
  %v1064 = vadd.f32 0.0, %v1063
  %v1065 = vpop.f32.mrf.mxu0
  %v1066 = vpop.f32.mrf.mxu0
  %v1067 = vpop.f32.mrf.mxu0
  %1068 = vdwg.mxu0
  %v1069 = vadd.f32 %v1024, %v1064
  %v1070 = vmax.f32 %v1069, 0.0
  %v1071 = vld [vmem:[%s537] sm:$0xff]
  %v1072 = vpack.c.bf16 %v1070, %v1070
  %v1074 = vsel %vm165, %v1072, 0
  %1076 = vmatprep.subr.bf16.mxu0 0
  %1077 = vmatpush1.bf16.msra.mxu0 0
  %1078 = vmatprep.subr.bf16.mxu0 0
  %1079 = vmatpush1.bf16.msra.mxu0 0
  %1080 = vmatprep.subr.bf16.mxu0 0
  %1081 = vmatpush1.bf16.msra.mxu0 0
  %1082 = vmatprep.subr.bf16.mxu0 0
  %1083 = vmatpush1.bf16.msra.mxu0 0
  %1084 = vmatprep.subr.bf16.mxu0 0
  %1085 = vmatpush1.bf16.msra.mxu0 0
  %1086 = vmatprep.subr.bf16.mxu0 0
  %1087 = vmatpush1.bf16.msra.mxu0 0
  %1088 = vmatprep.subr.bf16.mxu0 0
  %1089 = vmatpush1.bf16.msra.mxu0 %v741
  %1090 = vmatprep.subr.bf16.mxu0 0
  %1091 = vmatpush1.bf16.msra.mxu0 %v740
  %1092 = vmatprep.subr.bf16.mxu0 0
  %1093 = vmatpush2.bf16.msra.mxu0 0
  %1094 = vmatprep.subr.bf16.mxu0 0
  %1095 = vmatpush2.bf16.msra.mxu0 0
  %1096 = vmatprep.subr.bf16.mxu0 0
  %1097 = vmatpush2.bf16.msra.mxu0 0
  %1098 = vmatprep.subr.bf16.mxu0 0
  %1099 = vmatpush2.bf16.msra.mxu0 0
  %1100 = vmatprep.subr.bf16.mxu0 0
  %1101 = vmatpush2.bf16.msra.mxu0 0
  %1102 = vmatprep.subr.bf16.mxu0 0
  %1103 = vmatpush2.bf16.msra.mxu0 0
  %1104 = vmatprep.subr.bf16.mxu0 0
  %1105 = vmatpush2.bf16.msra.mxu0 0
  %1106 = vmatprep.subr.bf16.mxu0 0
  %1107 = vmatpush2.bf16.msra.mxu0 0
  %1108 = vmatprep.mubr.bf16.mxu0 0
  %1109 = vmatmul.mubr.bf16.gmra.mxu0 %v1074
  %v1110 = vpop.f32.mrf.mxu0
  %v1111 = vadd.f32 0.0, %v1110
  %v1112 = vpop.f32.mrf.mxu0
  %v1113 = vpop.f32.mrf.mxu0
  %v1114 = vpop.f32.mrf.mxu0
  %1115 = vdwg.mxu0
  %v1116 = vadd.f32 %v1071, %v1111
  %v1117 = vmax.f32 %v1116, 0.0
  %1118 = vst.msk [vmem:[%s728] sm:$0xff] %vm165, %v1117
  // Predicated region
  $region42: #{rnn_v0_forward.1} parent=0 // pred_check
    %p1119 = pneg %p33
  $region43: #{rnn_v0_forward.1} parent=0 // pred_check_branch
    %1121 = sbr.rel (%p1119) target = $region45
  $region44: #{rnn_v0_forward.1} parent=0 // pred_region
    %v1122 = vpack.c.bf16 %v1117, %v1117
    %v1123 = vld [vmem:[%s7] sm:$0xf]
    %v1124 = vld [vmem:[%s7 + $0x4] sm:$0xf]
    %v1125 = vld [vmem:[%s7 + $0x8] sm:$0xf]
    %v1126 = vld [vmem:[%s7 + $0xc] sm:$0xf]
    %v1127 = vld [vmem:[%s8] sm:$0x1]
    %v1129 = vlaneseq
    %v1130 = vshrl.u32 %v1129, 7
    %v1131 = vsub.s32 0, %v1130
    %v1132 = vrot.slane %v1127, %v1131
    %v1138 = vunpack.c.l.b16 %v1123
    %v1139 = vunpack.c.l.b16 %v1124
    %v1140 = vunpack.c.l.b16 %v1125
    %v1141 = vunpack.c.l.b16 %v1126
    %v1142 = vpack.c.b16 %v1139, %v1138
    %v1143 = vpack.c.b16 %v1141, %v1140
    %v1147 = vsel %vm165, %v1122, 0
    %1149 = vmatprep.subr.bf16.mxu0 0
    %1150 = vmatpush1.bf16.msra.mxu0 0
    %1151 = vmatprep.subr.bf16.mxu0 0
    %1152 = vmatpush1.bf16.msra.mxu0 0
    %1153 = vmatprep.subr.bf16.mxu0 0
    %1154 = vmatpush1.bf16.msra.mxu0 0
    %1155 = vmatprep.subr.bf16.mxu0 0
    %1156 = vmatpush1.bf16.msra.mxu0 0
    %1157 = vmatprep.subr.bf16.mxu0 0
    %1158 = vmatpush1.bf16.msra.mxu0 0
    %1159 = vmatprep.subr.bf16.mxu0 0
    %1160 = vmatpush1.bf16.msra.mxu0 0
    %1161 = vmatprep.subr.bf16.mxu0 0
    %1162 = vmatpush1.bf16.msra.mxu0 %v1143
    %1163 = vmatprep.subr.bf16.mxu0 0
    %1164 = vmatpush1.bf16.msra.mxu0 %v1142
    %1165 = vmatprep.subr.bf16.mxu0 0
    %1166 = vmatpush2.bf16.msra.mxu0 0
    %1167 = vmatprep.subr.bf16.mxu0 0
    %1168 = vmatpush2.bf16.msra.mxu0 0
    %1169 = vmatprep.subr.bf16.mxu0 0
    %1170 = vmatpush2.bf16.msra.mxu0 0
    %1171 = vmatprep.subr.bf16.mxu0 0
    %1172 = vmatpush2.bf16.msra.mxu0 0
    %1173 = vmatprep.subr.bf16.mxu0 0
    %1174 = vmatpush2.bf16.msra.mxu0 0
    %1175 = vmatprep.subr.bf16.mxu0 0
    %1176 = vmatpush2.bf16.msra.mxu0 0
    %1177 = vmatprep.subr.bf16.mxu0 0
    %1178 = vmatpush2.bf16.msra.mxu0 0
    %1179 = vmatprep.subr.bf16.mxu0 0
    %1180 = vmatpush2.bf16.msra.mxu0 0
    %1181 = vmatprep.mubr.bf16.mxu0 0
    %1182 = vmatmul.mubr.bf16.gmra.mxu0 %v1147
    %v1183 = vpop.f32.mrf.mxu0
    %v1184 = vadd.f32 %v1132, %v1183
    %v1185 = vpop.f32.mrf.mxu0
    %v1186 = vpop.f32.mrf.mxu0
    %v1187 = vpop.f32.mrf.mxu0
    %1188 = vdwg.mxu0
    %1189 = vst [vmem:[%s9] sm:$0xff] %v1184
  $region45: #{rnn_v0_forward.1} parent=0 // pred_fallthru
    _
  // Predicated region
  $region46: #{rnn_v0_forward.1} parent=0 // pred_check
    _
  $region47: #{rnn_v0_forward.1} parent=0 // pred_check_branch
    %1191 = sbr.rel (0) target = $region49
  $region48: #{rnn_v0_forward.1} parent=0 // pred_region
    _
  $region49: #{rnn_v0_forward.1} parent=0 // pred_fallthru
    _
  // Predicated region
  $region50: #{rnn_v0_forward.1} parent=0 // pred_check
    _
  $region51: #{rnn_v0_forward.1} parent=0 // pred_check_branch
    %1193 = sbr.rel (0) target = $region53
  $region52: #{rnn_v0_forward.1} parent=0 // pred_region
    _
  $region53: #{rnn_v0_forward.1} parent=0 // pred_fallthru
    _

</llo_original>
